<compile_context>
chip_gen: v7x
topology: tpu7x:2x2x1
jax: 0.10.0
libtpu: 0.0.40
codegen_flags: <defaults>
</compile_context>

<pallas_src>
import jax
import jax.numpy as jnp
import numpy as np
from jax import lax
from jax.experimental import pallas as pl
from jax.experimental.pallas import tpu as pltpu

H = 64            # LSTM hidden size
GATE = 4 * H      # 256 = concat of gates, reordered to [i, f, o, g]
F_IN_PAD = 8      # 2 input features zero-padded to one sublane group
OUT_PAD = 128     # final 2 output features padded to one full lane group


def _round_up(x, m):
    return (x + m - 1) // m * m


def cpanet_kernel(x_ref, wih_ref, bias_ref, whh_ref, w1_ref, b1_ref, w2_ref, b2_ref,
                  out_ref, pre_scr):
    # x_ref:    (T*Bp, F_IN_PAD)  time-major flattened input, zero-padded
    # wih_ref:  (F_IN_PAD, GATE)  W_ih^T, gate cols reordered [i,f,o,g], i/f/o * 0.5
    # bias_ref: (1, GATE)         (b_ih + b_hh), same reorder/scale
    # whh_ref:  (H, GATE)         W_hh^T, same reorder/scale
    # w1_ref:   (H, H), b1_ref: (1, H)
    # w2_ref:   (H, OUT_PAD), b2_ref: (1, OUT_PAD)  zero-padded beyond col 2
    # out_ref:  (Bp, OUT_PAD)
    # pre_scr:  (T, Bp, GATE)     VMEM scratch holding the hoisted input projection
    T, Bp, _ = pre_scr.shape

    # One-shot input projection for ALL timesteps (hoisted out of the recurrence).
    pre = (jnp.dot(x_ref[...], wih_ref[...], preferred_element_type=jnp.float32)
           + bias_ref[...])                              # (T*Bp, GATE)
    pre_scr[...] = pre.reshape(T, Bp, GATE)

    whh = whh_ref[...]                                   # loaded once, stays in vregs
    h0 = jnp.zeros((Bp, H), jnp.float32)
    c0 = jnp.zeros((Bp, H), jnp.float32)

    def step(t, carry):
        h, c = carry
        gates = pre_scr[t] + jnp.dot(h, whh, preferred_element_type=jnp.float32)
        act = jnp.tanh(gates)                            # single EUP pass over all 4 gates
        ifo = 0.5 * act[:, 0:3 * H] + 0.5                # sigmoid(z) = 0.5*tanh(z/2)+0.5 (exact)
        i = ifo[:, 0:H]
        f = ifo[:, H:2 * H]
        o = ifo[:, 2 * H:3 * H]
        g = act[:, 3 * H:4 * H]
        c = f * c + i * g
        h = o * jnp.tanh(c)
        return (h, c)

    h_fin, _ = lax.fori_loop(0, T, step, (h0, c0), unroll=True)

    # dense1 + relu, dense2 (lane-dense (Bp, 128) output store)
    z1 = jnp.dot(h_fin, w1_ref[...], preferred_element_type=jnp.float32) + b1_ref[...]
    z1 = jnp.maximum(z1, 0.0)
    out_ref[...] = (jnp.dot(z1, w2_ref[...], preferred_element_type=jnp.float32)
                    + b2_ref[...])


def _prep_gate_params(w_ih, w_hh, b_ih, b_hh):
    """Reorder PyTorch gate rows [i,f,g,o] -> [i,f,o,g]; pre-scale i/f/o by 0.5."""
    def reorder(w):                                      # w: (4H, K), row-blocked gates
        i, f, g, o = w[0:H], w[H:2 * H], w[2 * H:3 * H], w[3 * H:4 * H]
        return jnp.concatenate([0.5 * i, 0.5 * f, 0.5 * o, g], axis=0)
    wih_r = reorder(w_ih)                                # (4H, 2)
    whh_r = reorder(w_hh)                                # (4H, H)
    b_r = reorder((b_ih + b_hh).reshape(GATE, 1)).reshape(1, GATE)
    return wih_r.T, whh_r.T, b_r                         # (2,4H), (H,4H), (1,4H)


def cpanet_forward(x0, y0, params):
    """x0, y0: (B, T, 1) float32 -> (B, 2) float32 (matches PyTorch CPANet.forward)."""
    B, T, _ = x0.shape
    Bp = max(_round_up(B, 8), 8)                         # batch padded to sublane multiple

    xcat = jnp.concatenate([x0, y0], axis=2).astype(jnp.float32)          # (B, T, 2)
    x_tm = jnp.transpose(xcat, (1, 0, 2))                                 # (T, B, 2)
    x_p = jnp.zeros((T, Bp, F_IN_PAD), jnp.float32).at[:, :B, :2].set(x_tm)
    x_flat = x_p.reshape(T * Bp, F_IN_PAD)

    wih_t, whh_t, b_r = _prep_gate_params(params["w_ih"], params["w_hh"],
                                          params["b_ih"], params["b_hh"])
    wih_p = jnp.zeros((F_IN_PAD, GATE), jnp.float32).at[:2, :].set(wih_t)
    w1 = params["w1"].T                                                    # (H, H)
    b1 = params["b1"].reshape(1, H)
    w2_p = jnp.zeros((H, OUT_PAD), jnp.float32).at[:, :2].set(params["w2"].T)
    b2_p = jnp.zeros((1, OUT_PAD), jnp.float32).at[:, :2].set(params["b2"].reshape(1, 2))

    vmem = pl.BlockSpec(memory_space=pltpu.MemorySpace.VMEM)
    out = pl.pallas_call(
        cpanet_kernel,
        out_shape=jax.ShapeDtypeStruct((Bp, OUT_PAD), jnp.float32),
        in_specs=[vmem] * 8,
        out_specs=vmem,
        scratch_shapes=[pltpu.VMEM((T, Bp, GATE), jnp.float32)],           # pre_gates
    )(x_flat, wih_p, b_r, whh_t, w1, b1, w2_p, b2_p)
    return out[:B, :2]


def cpanet_ref(x0, y0, params):
    """Pure-JAX reference mirroring torch.nn.LSTM + Linear semantics."""
    xcat = jnp.concatenate([x0, y0], axis=2).astype(jnp.float32)
    B, T, _ = xcat.shape
    h = jnp.zeros((B, H), jnp.float32)
    c = jnp.zeros((B, H), jnp.float32)
    for t in range(T):
        x_t = xcat[:, t, :]
        gates = (x_t @ params["w_ih"].T + params["b_ih"]
                 + h @ params["w_hh"].T + params["b_hh"])
        i = jax.nn.sigmoid(gates[:, 0:H])
        f = jax.nn.sigmoid(gates[:, H:2 * H])
        g = jnp.tanh(gates[:, 2 * H:3 * H])
        o = jax.nn.sigmoid(gates[:, 3 * H:4 * H])
        c = f * c + i * g
        h = o * jnp.tanh(c)
    z = jax.nn.relu(h @ params["w1"].T + params["b1"])
    return z @ params["w2"].T + params["b2"]


def init_params(key):
    """Deterministic init matching PyTorch shapes (LSTM(2,64), Linear(64,64), Linear(64,2))."""
    ks = jax.random.split(key, 8)
    stdv = 1.0 / np.sqrt(H)

    def u(k, shape, s):
        return jax.random.uniform(k, shape, jnp.float32, -s, s)

    return {
        "w_ih": u(ks[0], (GATE, 2), stdv),
        "w_hh": u(ks[1], (GATE, H), stdv),
        "b_ih": u(ks[2], (GATE,), stdv),
        "b_hh": u(ks[3], (GATE,), stdv),
        "w1": u(ks[4], (H, H), stdv),
        "b1": u(ks[5], (H,), stdv),
        "w2": u(ks[6], (2, H), stdv),
        "b2": u(ks[7], (2,), stdv),
    }


if __name__ == "__main__":
    key = jax.random.PRNGKey(0)
    kp, kx, ky = jax.random.split(key, 3)
    params = init_params(kp)

    B, T = 2, 8
    x0 = jax.random.normal(kx, (B, T, 1), jnp.float32)
    y0 = jax.random.normal(ky, (B, T, 1), jnp.float32)

    out = cpanet_forward(x0, y0, params)
    out = jax.block_until_ready(out)

    ref = cpanet_ref(x0, y0, params)
    assert out.shape == (B, 2)
    assert np.allclose(np.asarray(out), np.asarray(ref), atol=1e-4, rtol=1e-4), (
        "Pallas output does not match JAX reference")
    print("KERNEL_OK")
</pallas_src>

<mosaic_0001>
module attributes {stable_mosaic.version = 11 : i64} {
  func.func @cpanet_kernel(%arg0: memref<64x8xf32, #tpu.memory_space<vmem>>, %arg1: memref<8x256xf32, #tpu.memory_space<vmem>>, %arg2: memref<1x256xf32, #tpu.memory_space<vmem>>, %arg3: memref<64x256xf32, #tpu.memory_space<vmem>>, %arg4: memref<64x64xf32, #tpu.memory_space<vmem>>, %arg5: memref<1x64xf32, #tpu.memory_space<vmem>>, %arg6: memref<64x128xf32, #tpu.memory_space<vmem>>, %arg7: memref<1x128xf32, #tpu.memory_space<vmem>>, %arg8: memref<8x128xf32, #tpu.memory_space<vmem>>, %arg9: memref<8x8x256xf32, #tpu.memory_space<vmem>>) attributes {dimension_semantics = [], scalar_prefetch = 0 : i64, scratch_operands = 1 : i64, tpu.core_type = #tpu.core_type<tc>} {
    %c0 = arith.constant 0 : index
    %c0_0 = arith.constant 0 : index
    %0 = vector.load %arg0[%c0, %c0_0] : memref<64x8xf32, #tpu.memory_space<vmem>>, vector<64x8xf32>
    %c0_1 = arith.constant 0 : index
    %c0_2 = arith.constant 0 : index
    %1 = vector.load %arg1[%c0_1, %c0_2] : memref<8x256xf32, #tpu.memory_space<vmem>>, vector<8x256xf32>
    %cst = arith.constant dense<0.000000e+00> : vector<64x256xf32>
    %2 = tpu.matmul %0, %1, %cst {dimension_numbers = #tpu.dot_dimension_numbers<[1], [0], [0], [1], [0, 0, 1, 1], [], []>} : vector<64x8xf32>, vector<8x256xf32>, vector<64x256xf32> -> vector<64x256xf32>
    %c0_3 = arith.constant 0 : index
    %c0_4 = arith.constant 0 : index
    %3 = vector.load %arg2[%c0_3, %c0_4] : memref<1x256xf32, #tpu.memory_space<vmem>>, vector<1x256xf32>
    %4 = vector.broadcast %3 : vector<1x256xf32> to vector<64x256xf32>
    %5 = arith.addf %2, %4 : vector<64x256xf32>
    %6 = vector.shape_cast %5 : vector<64x256xf32> to vector<8x8x256xf32>
    %c0_5 = arith.constant 0 : index
    %c0_6 = arith.constant 0 : index
    %c0_7 = arith.constant 0 : index
    %7 = vector.load %arg9[%c0_5, %c0_6, %c0_7] : memref<8x8x256xf32, #tpu.memory_space<vmem>>, vector<8x8x256xf32>
    tpu.vector_store %arg9[%c0_5, %c0_6, %c0_7], %6 {strides = array<i32>} : memref<8x8x256xf32, #tpu.memory_space<vmem>>, vector<8x8x256xf32>,
    %c0_8 = arith.constant 0 : index
    %c0_9 = arith.constant 0 : index
    %8 = vector.load %arg3[%c0_8, %c0_9] : memref<64x256xf32, #tpu.memory_space<vmem>>, vector<64x256xf32>
    %cst_10 = arith.constant 0.000000e+00 : f32
    %9 = vector.broadcast %cst_10 : f32 to vector<8x64xf32>
    %cst_11 = arith.constant 0.000000e+00 : f32
    %10 = vector.broadcast %cst_11 : f32 to vector<8x64xf32>
    %c0_i32 = arith.constant 0 : i32
    %11 = arith.index_cast %c0_i32 : i32 to index
    %c0_12 = arith.constant 0 : index
    %c0_13 = arith.constant 0 : index
    %12 = vector.load %arg9[%11, %c0_12, %c0_13] : memref<8x8x256xf32, #tpu.memory_space<vmem>>, vector<1x8x256xf32>
    %13 = vector.shape_cast %12 : vector<1x8x256xf32> to vector<8x256xf32>
    %cst_14 = arith.constant dense<0.000000e+00> : vector<8x256xf32>
    %14 = tpu.matmul %9, %8, %cst_14 {dimension_numbers = #tpu.dot_dimension_numbers<[1], [0], [0], [1], [0, 0, 1, 1], [], []>} : vector<8x64xf32>, vector<64x256xf32>, vector<8x256xf32> -> vector<8x256xf32>
    %15 = arith.addf %13, %14 : vector<8x256xf32>
    %16 = math.tanh %15 : vector<8x256xf32>
    %17 = vector.extract_strided_slice %16 {offsets = [0, 0], sizes = [8, 192], strides = [1, 1]} : vector<8x256xf32> to vector<8x192xf32>
    %cst_15 = arith.constant 5.000000e-01 : f32
    %18 = vector.broadcast %cst_15 : f32 to vector<8x192xf32>
    %19 = arith.mulf %18, %17 : vector<8x192xf32>
    %cst_16 = arith.constant 5.000000e-01 : f32
    %20 = vector.broadcast %cst_16 : f32 to vector<8x192xf32>
    %21 = arith.addf %19, %20 : vector<8x192xf32>
    %22 = vector.extract_strided_slice %21 {offsets = [0, 0], sizes = [8, 64], strides = [1, 1]} : vector<8x192xf32> to vector<8x64xf32>
    %23 = vector.extract_strided_slice %21 {offsets = [0, 64], sizes = [8, 64], strides = [1, 1]} : vector<8x192xf32> to vector<8x64xf32>
    %24 = vector.extract_strided_slice %21 {offsets = [0, 128], sizes = [8, 64], strides = [1, 1]} : vector<8x192xf32> to vector<8x64xf32>
    %25 = vector.extract_strided_slice %16 {offsets = [0, 192], sizes = [8, 64], strides = [1, 1]} : vector<8x256xf32> to vector<8x64xf32>
    %26 = arith.mulf %23, %10 : vector<8x64xf32>
    %27 = arith.mulf %22, %25 : vector<8x64xf32>
    %28 = arith.addf %26, %27 : vector<8x64xf32>
    %29 = math.tanh %28 : vector<8x64xf32>
    %30 = arith.mulf %24, %29 : vector<8x64xf32>
    %c1_i32 = arith.constant 1 : i32
    %31 = arith.index_cast %c1_i32 : i32 to index
    %c0_17 = arith.constant 0 : index
    %c0_18 = arith.constant 0 : index
    %32 = vector.load %arg9[%31, %c0_17, %c0_18] : memref<8x8x256xf32, #tpu.memory_space<vmem>>, vector<1x8x256xf32>
    %33 = vector.shape_cast %32 : vector<1x8x256xf32> to vector<8x256xf32>
    %cst_19 = arith.constant dense<0.000000e+00> : vector<8x256xf32>
    %34 = tpu.matmul %30, %8, %cst_19 {dimension_numbers = #tpu.dot_dimension_numbers<[1], [0], [0], [1], [0, 0, 1, 1], [], []>} : vector<8x64xf32>, vector<64x256xf32>, vector<8x256xf32> -> vector<8x256xf32>
    %35 = arith.addf %33, %34 : vector<8x256xf32>
    %36 = math.tanh %35 : vector<8x256xf32>
    %37 = vector.extract_strided_slice %36 {offsets = [0, 0], sizes = [8, 192], strides = [1, 1]} : vector<8x256xf32> to vector<8x192xf32>
    %cst_20 = arith.constant 5.000000e-01 : f32
    %38 = vector.broadcast %cst_20 : f32 to vector<8x192xf32>
    %39 = arith.mulf %38, %37 : vector<8x192xf32>
    %cst_21 = arith.constant 5.000000e-01 : f32
    %40 = vector.broadcast %cst_21 : f32 to vector<8x192xf32>
    %41 = arith.addf %39, %40 : vector<8x192xf32>
    %42 = vector.extract_strided_slice %41 {offsets = [0, 0], sizes = [8, 64], strides = [1, 1]} : vector<8x192xf32> to vector<8x64xf32>
    %43 = vector.extract_strided_slice %41 {offsets = [0, 64], sizes = [8, 64], strides = [1, 1]} : vector<8x192xf32> to vector<8x64xf32>
    %44 = vector.extract_strided_slice %41 {offsets = [0, 128], sizes = [8, 64], strides = [1, 1]} : vector<8x192xf32> to vector<8x64xf32>
    %45 = vector.extract_strided_slice %36 {offsets = [0, 192], sizes = [8, 64], strides = [1, 1]} : vector<8x256xf32> to vector<8x64xf32>
    %46 = arith.mulf %43, %28 : vector<8x64xf32>
    %47 = arith.mulf %42, %45 : vector<8x64xf32>
    %48 = arith.addf %46, %47 : vector<8x64xf32>
    %49 = math.tanh %48 : vector<8x64xf32>
    %50 = arith.mulf %44, %49 : vector<8x64xf32>
    %c2_i32 = arith.constant 2 : i32
    %51 = arith.index_cast %c2_i32 : i32 to index
    %c0_22 = arith.constant 0 : index
    %c0_23 = arith.constant 0 : index
    %52 = vector.load %arg9[%51, %c0_22, %c0_23] : memref<8x8x256xf32, #tpu.memory_space<vmem>>, vector<1x8x256xf32>
    %53 = vector.shape_cast %52 : vector<1x8x256xf32> to vector<8x256xf32>
    %cst_24 = arith.constant dense<0.000000e+00> : vector<8x256xf32>
    %54 = tpu.matmul %50, %8, %cst_24 {dimension_numbers = #tpu.dot_dimension_numbers<[1], [0], [0], [1], [0, 0, 1, 1], [], []>} : vector<8x64xf32>, vector<64x256xf32>, vector<8x256xf32> -> vector<8x256xf32>
    %55 = arith.addf %53, %54 : vector<8x256xf32>
    %56 = math.tanh %55 : vector<8x256xf32>
    %57 = vector.extract_strided_slice %56 {offsets = [0, 0], sizes = [8, 192], strides = [1, 1]} : vector<8x256xf32> to vector<8x192xf32>
    %cst_25 = arith.constant 5.000000e-01 : f32
    %58 = vector.broadcast %cst_25 : f32 to vector<8x192xf32>
    %59 = arith.mulf %58, %57 : vector<8x192xf32>
    %cst_26 = arith.constant 5.000000e-01 : f32
    %60 = vector.broadcast %cst_26 : f32 to vector<8x192xf32>
    %61 = arith.addf %59, %60 : vector<8x192xf32>
    %62 = vector.extract_strided_slice %61 {offsets = [0, 0], sizes = [8, 64], strides = [1, 1]} : vector<8x192xf32> to vector<8x64xf32>
    %63 = vector.extract_strided_slice %61 {offsets = [0, 64], sizes = [8, 64], strides = [1, 1]} : vector<8x192xf32> to vector<8x64xf32>
    %64 = vector.extract_strided_slice %61 {offsets = [0, 128], sizes = [8, 64], strides = [1, 1]} : vector<8x192xf32> to vector<8x64xf32>
    %65 = vector.extract_strided_slice %56 {offsets = [0, 192], sizes = [8, 64], strides = [1, 1]} : vector<8x256xf32> to vector<8x64xf32>
    %66 = arith.mulf %63, %48 : vector<8x64xf32>
    %67 = arith.mulf %62, %65 : vector<8x64xf32>
    %68 = arith.addf %66, %67 : vector<8x64xf32>
    %69 = math.tanh %68 : vector<8x64xf32>
    %70 = arith.mulf %64, %69 : vector<8x64xf32>
    %c3_i32 = arith.constant 3 : i32
    %71 = arith.index_cast %c3_i32 : i32 to index
    %c0_27 = arith.constant 0 : index
    %c0_28 = arith.constant 0 : index
    %72 = vector.load %arg9[%71, %c0_27, %c0_28] : memref<8x8x256xf32, #tpu.memory_space<vmem>>, vector<1x8x256xf32>
    %73 = vector.shape_cast %72 : vector<1x8x256xf32> to vector<8x256xf32>
    %cst_29 = arith.constant dense<0.000000e+00> : vector<8x256xf32>
    %74 = tpu.matmul %70, %8, %cst_29 {dimension_numbers = #tpu.dot_dimension_numbers<[1], [0], [0], [1], [0, 0, 1, 1], [], []>} : vector<8x64xf32>, vector<64x256xf32>, vector<8x256xf32> -> vector<8x256xf32>
    %75 = arith.addf %73, %74 : vector<8x256xf32>
    %76 = math.tanh %75 : vector<8x256xf32>
    %77 = vector.extract_strided_slice %76 {offsets = [0, 0], sizes = [8, 192], strides = [1, 1]} : vector<8x256xf32> to vector<8x192xf32>
    %cst_30 = arith.constant 5.000000e-01 : f32
    %78 = vector.broadcast %cst_30 : f32 to vector<8x192xf32>
    %79 = arith.mulf %78, %77 : vector<8x192xf32>
    %cst_31 = arith.constant 5.000000e-01 : f32
    %80 = vector.broadcast %cst_31 : f32 to vector<8x192xf32>
    %81 = arith.addf %79, %80 : vector<8x192xf32>
    %82 = vector.extract_strided_slice %81 {offsets = [0, 0], sizes = [8, 64], strides = [1, 1]} : vector<8x192xf32> to vector<8x64xf32>
    %83 = vector.extract_strided_slice %81 {offsets = [0, 64], sizes = [8, 64], strides = [1, 1]} : vector<8x192xf32> to vector<8x64xf32>
    %84 = vector.extract_strided_slice %81 {offsets = [0, 128], sizes = [8, 64], strides = [1, 1]} : vector<8x192xf32> to vector<8x64xf32>
    %85 = vector.extract_strided_slice %76 {offsets = [0, 192], sizes = [8, 64], strides = [1, 1]} : vector<8x256xf32> to vector<8x64xf32>
    %86 = arith.mulf %83, %68 : vector<8x64xf32>
    %87 = arith.mulf %82, %85 : vector<8x64xf32>
    %88 = arith.addf %86, %87 : vector<8x64xf32>
    %89 = math.tanh %88 : vector<8x64xf32>
    %90 = arith.mulf %84, %89 : vector<8x64xf32>
    %c4_i32 = arith.constant 4 : i32
    %91 = arith.index_cast %c4_i32 : i32 to index
    %c0_32 = arith.constant 0 : index
    %c0_33 = arith.constant 0 : index
    %92 = vector.load %arg9[%91, %c0_32, %c0_33] : memref<8x8x256xf32, #tpu.memory_space<vmem>>, vector<1x8x256xf32>
    %93 = vector.shape_cast %92 : vector<1x8x256xf32> to vector<8x256xf32>
    %cst_34 = arith.constant dense<0.000000e+00> : vector<8x256xf32>
    %94 = tpu.matmul %90, %8, %cst_34 {dimension_numbers = #tpu.dot_dimension_numbers<[1], [0], [0], [1], [0, 0, 1, 1], [], []>} : vector<8x64xf32>, vector<64x256xf32>, vector<8x256xf32> -> vector<8x256xf32>
    %95 = arith.addf %93, %94 : vector<8x256xf32>
    %96 = math.tanh %95 : vector<8x256xf32>
    %97 = vector.extract_strided_slice %96 {offsets = [0, 0], sizes = [8, 192], strides = [1, 1]} : vector<8x256xf32> to vector<8x192xf32>
    %cst_35 = arith.constant 5.000000e-01 : f32
    %98 = vector.broadcast %cst_35 : f32 to vector<8x192xf32>
    %99 = arith.mulf %98, %97 : vector<8x192xf32>
    %cst_36 = arith.constant 5.000000e-01 : f32
    %100 = vector.broadcast %cst_36 : f32 to vector<8x192xf32>
    %101 = arith.addf %99, %100 : vector<8x192xf32>
    %102 = vector.extract_strided_slice %101 {offsets = [0, 0], sizes = [8, 64], strides = [1, 1]} : vector<8x192xf32> to vector<8x64xf32>
    %103 = vector.extract_strided_slice %101 {offsets = [0, 64], sizes = [8, 64], strides = [1, 1]} : vector<8x192xf32> to vector<8x64xf32>
    %104 = vector.extract_strided_slice %101 {offsets = [0, 128], sizes = [8, 64], strides = [1, 1]} : vector<8x192xf32> to vector<8x64xf32>
    %105 = vector.extract_strided_slice %96 {offsets = [0, 192], sizes = [8, 64], strides = [1, 1]} : vector<8x256xf32> to vector<8x64xf32>
    %106 = arith.mulf %103, %88 : vector<8x64xf32>
    %107 = arith.mulf %102, %105 : vector<8x64xf32>
    %108 = arith.addf %106, %107 : vector<8x64xf32>
    %109 = math.tanh %108 : vector<8x64xf32>
    %110 = arith.mulf %104, %109 : vector<8x64xf32>
    %c5_i32 = arith.constant 5 : i32
    %111 = arith.index_cast %c5_i32 : i32 to index
    %c0_37 = arith.constant 0 : index
    %c0_38 = arith.constant 0 : index
    %112 = vector.load %arg9[%111, %c0_37, %c0_38] : memref<8x8x256xf32, #tpu.memory_space<vmem>>, vector<1x8x256xf32>
    %113 = vector.shape_cast %112 : vector<1x8x256xf32> to vector<8x256xf32>
    %cst_39 = arith.constant dense<0.000000e+00> : vector<8x256xf32>
    %114 = tpu.matmul %110, %8, %cst_39 {dimension_numbers = #tpu.dot_dimension_numbers<[1], [0], [0], [1], [0, 0, 1, 1], [], []>} : vector<8x64xf32>, vector<64x256xf32>, vector<8x256xf32> -> vector<8x256xf32>
    %115 = arith.addf %113, %114 : vector<8x256xf32>
    %116 = math.tanh %115 : vector<8x256xf32>
    %117 = vector.extract_strided_slice %116 {offsets = [0, 0], sizes = [8, 192], strides = [1, 1]} : vector<8x256xf32> to vector<8x192xf32>
    %cst_40 = arith.constant 5.000000e-01 : f32
    %118 = vector.broadcast %cst_40 : f32 to vector<8x192xf32>
    %119 = arith.mulf %118, %117 : vector<8x192xf32>
    %cst_41 = arith.constant 5.000000e-01 : f32
    %120 = vector.broadcast %cst_41 : f32 to vector<8x192xf32>
    %121 = arith.addf %119, %120 : vector<8x192xf32>
    %122 = vector.extract_strided_slice %121 {offsets = [0, 0], sizes = [8, 64], strides = [1, 1]} : vector<8x192xf32> to vector<8x64xf32>
    %123 = vector.extract_strided_slice %121 {offsets = [0, 64], sizes = [8, 64], strides = [1, 1]} : vector<8x192xf32> to vector<8x64xf32>
    %124 = vector.extract_strided_slice %121 {offsets = [0, 128], sizes = [8, 64], strides = [1, 1]} : vector<8x192xf32> to vector<8x64xf32>
    %125 = vector.extract_strided_slice %116 {offsets = [0, 192], sizes = [8, 64], strides = [1, 1]} : vector<8x256xf32> to vector<8x64xf32>
    %126 = arith.mulf %123, %108 : vector<8x64xf32>
    %127 = arith.mulf %122, %125 : vector<8x64xf32>
    %128 = arith.addf %126, %127 : vector<8x64xf32>
    %129 = math.tanh %128 : vector<8x64xf32>
    %130 = arith.mulf %124, %129 : vector<8x64xf32>
    %c6_i32 = arith.constant 6 : i32
    %131 = arith.index_cast %c6_i32 : i32 to index
    %c0_42 = arith.constant 0 : index
    %c0_43 = arith.constant 0 : index
    %132 = vector.load %arg9[%131, %c0_42, %c0_43] : memref<8x8x256xf32, #tpu.memory_space<vmem>>, vector<1x8x256xf32>
    %133 = vector.shape_cast %132 : vector<1x8x256xf32> to vector<8x256xf32>
    %cst_44 = arith.constant dense<0.000000e+00> : vector<8x256xf32>
    %134 = tpu.matmul %130, %8, %cst_44 {dimension_numbers = #tpu.dot_dimension_numbers<[1], [0], [0], [1], [0, 0, 1, 1], [], []>} : vector<8x64xf32>, vector<64x256xf32>, vector<8x256xf32> -> vector<8x256xf32>
    %135 = arith.addf %133, %134 : vector<8x256xf32>
    %136 = math.tanh %135 : vector<8x256xf32>
    %137 = vector.extract_strided_slice %136 {offsets = [0, 0], sizes = [8, 192], strides = [1, 1]} : vector<8x256xf32> to vector<8x192xf32>
    %cst_45 = arith.constant 5.000000e-01 : f32
    %138 = vector.broadcast %cst_45 : f32 to vector<8x192xf32>
    %139 = arith.mulf %138, %137 : vector<8x192xf32>
    %cst_46 = arith.constant 5.000000e-01 : f32
    %140 = vector.broadcast %cst_46 : f32 to vector<8x192xf32>
    %141 = arith.addf %139, %140 : vector<8x192xf32>
    %142 = vector.extract_strided_slice %141 {offsets = [0, 0], sizes = [8, 64], strides = [1, 1]} : vector<8x192xf32> to vector<8x64xf32>
    %143 = vector.extract_strided_slice %141 {offsets = [0, 64], sizes = [8, 64], strides = [1, 1]} : vector<8x192xf32> to vector<8x64xf32>
    %144 = vector.extract_strided_slice %141 {offsets = [0, 128], sizes = [8, 64], strides = [1, 1]} : vector<8x192xf32> to vector<8x64xf32>
    %145 = vector.extract_strided_slice %136 {offsets = [0, 192], sizes = [8, 64], strides = [1, 1]} : vector<8x256xf32> to vector<8x64xf32>
    %146 = arith.mulf %143, %128 : vector<8x64xf32>
    %147 = arith.mulf %142, %145 : vector<8x64xf32>
    %148 = arith.addf %146, %147 : vector<8x64xf32>
    %149 = math.tanh %148 : vector<8x64xf32>
    %150 = arith.mulf %144, %149 : vector<8x64xf32>
    %c7_i32 = arith.constant 7 : i32
    %151 = arith.index_cast %c7_i32 : i32 to index
    %c0_47 = arith.constant 0 : index
    %c0_48 = arith.constant 0 : index
    %152 = vector.load %arg9[%151, %c0_47, %c0_48] : memref<8x8x256xf32, #tpu.memory_space<vmem>>, vector<1x8x256xf32>
    %153 = vector.shape_cast %152 : vector<1x8x256xf32> to vector<8x256xf32>
    %cst_49 = arith.constant dense<0.000000e+00> : vector<8x256xf32>
    %154 = tpu.matmul %150, %8, %cst_49 {dimension_numbers = #tpu.dot_dimension_numbers<[1], [0], [0], [1], [0, 0, 1, 1], [], []>} : vector<8x64xf32>, vector<64x256xf32>, vector<8x256xf32> -> vector<8x256xf32>
    %155 = arith.addf %153, %154 : vector<8x256xf32>
    %156 = math.tanh %155 : vector<8x256xf32>
    %157 = vector.extract_strided_slice %156 {offsets = [0, 0], sizes = [8, 192], strides = [1, 1]} : vector<8x256xf32> to vector<8x192xf32>
    %cst_50 = arith.constant 5.000000e-01 : f32
    %158 = vector.broadcast %cst_50 : f32 to vector<8x192xf32>
    %159 = arith.mulf %158, %157 : vector<8x192xf32>
    %cst_51 = arith.constant 5.000000e-01 : f32
    %160 = vector.broadcast %cst_51 : f32 to vector<8x192xf32>
    %161 = arith.addf %159, %160 : vector<8x192xf32>
    %162 = vector.extract_strided_slice %161 {offsets = [0, 0], sizes = [8, 64], strides = [1, 1]} : vector<8x192xf32> to vector<8x64xf32>
    %163 = vector.extract_strided_slice %161 {offsets = [0, 64], sizes = [8, 64], strides = [1, 1]} : vector<8x192xf32> to vector<8x64xf32>
    %164 = vector.extract_strided_slice %161 {offsets = [0, 128], sizes = [8, 64], strides = [1, 1]} : vector<8x192xf32> to vector<8x64xf32>
    %165 = vector.extract_strided_slice %156 {offsets = [0, 192], sizes = [8, 64], strides = [1, 1]} : vector<8x256xf32> to vector<8x64xf32>
    %166 = arith.mulf %163, %148 : vector<8x64xf32>
    %167 = arith.mulf %162, %165 : vector<8x64xf32>
    %168 = arith.addf %166, %167 : vector<8x64xf32>
    %169 = math.tanh %168 : vector<8x64xf32>
    %170 = arith.mulf %164, %169 : vector<8x64xf32>
    %c8_i32 = arith.constant 8 : i32
    %c0_52 = arith.constant 0 : index
    %c0_53 = arith.constant 0 : index
    %171 = vector.load %arg4[%c0_52, %c0_53] : memref<64x64xf32, #tpu.memory_space<vmem>>, vector<64x64xf32>
    %cst_54 = arith.constant dense<0.000000e+00> : vector<8x64xf32>
    %172 = tpu.matmul %170, %171, %cst_54 {dimension_numbers = #tpu.dot_dimension_numbers<[1], [0], [0], [1], [0, 0, 1, 1], [], []>} : vector<8x64xf32>, vector<64x64xf32>, vector<8x64xf32> -> vector<8x64xf32>
    %c0_55 = arith.constant 0 : index
    %c0_56 = arith.constant 0 : index
    %173 = vector.load %arg5[%c0_55, %c0_56] : memref<1x64xf32, #tpu.memory_space<vmem>>, vector<1x64xf32>
    %174 = vector.broadcast %173 : vector<1x64xf32> to vector<8x64xf32>
    %175 = arith.addf %172, %174 : vector<8x64xf32>
    %cst_57 = arith.constant 0.000000e+00 : f32
    %176 = vector.broadcast %cst_57 : f32 to vector<8x64xf32>
    %177 = arith.maximumf %175, %176 : vector<8x64xf32>
    %c0_58 = arith.constant 0 : index
    %c0_59 = arith.constant 0 : index
    %178 = vector.load %arg6[%c0_58, %c0_59] : memref<64x128xf32, #tpu.memory_space<vmem>>, vector<64x128xf32>
    %cst_60 = arith.constant dense<0.000000e+00> : vector<8x128xf32>
    %179 = tpu.matmul %177, %178, %cst_60 {dimension_numbers = #tpu.dot_dimension_numbers<[1], [0], [0], [1], [0, 0, 1, 1], [], []>} : vector<8x64xf32>, vector<64x128xf32>, vector<8x128xf32> -> vector<8x128xf32>
    %c0_61 = arith.constant 0 : index
    %c0_62 = arith.constant 0 : index
    %180 = vector.load %arg7[%c0_61, %c0_62] : memref<1x128xf32, #tpu.memory_space<vmem>>, vector<1x128xf32>
    %181 = vector.broadcast %180 : vector<1x128xf32> to vector<8x128xf32>
    %182 = arith.addf %179, %181 : vector<8x128xf32>
    %c0_63 = arith.constant 0 : index
    %c0_64 = arith.constant 0 : index
    %183 = vector.load %arg8[%c0_63, %c0_64] : memref<8x128xf32, #tpu.memory_space<vmem>>, vector<8x128xf32>
    tpu.vector_store %arg8[%c0_63, %c0_64], %182 {strides = array<i32>} : memref<8x128xf32, #tpu.memory_space<vmem>>, vector<8x128xf32>,
    return
  }
}

</mosaic_0001>

<llo_original>
// kernel: tpu_custom_call.1
$region0: #{tpu_custom_call.1}
  #allocation0 [shape = 'u32[]', space=smem, size = 0x4, offset = 0x4, fixed_abs, tag = 'smem constant byte address 0x4 - core index']
  #allocation1 [shape = 'u32[144,128]{1,0:T(1,128)}', space=vmem, size = 0x12000, scoped, tag = 'internal scratch']
  #allocation2 [shape = 'f32[8,8,256]{2,1,0:T(8,128)}', space=vmem, size = 0x10000, scoped, tag = 'scratch operand']
  %s0 = inlined_call_operand.vmem [shape: f32[64,8], index: 0, kind: input, shape index: {}]
  %s1 = inlined_call_operand.vmem [shape: f32[8,256], index: 1, kind: input, shape index: {}]
  %s2 = inlined_call_operand.vmem [shape: f32[1,256], index: 2, kind: input, shape index: {}]
  %s3 = inlined_call_operand.hbm [shape: f32[64,256], index: 3, kind: input, shape index: {}]
  %s4 = inlined_call_operand.vmem [shape: f32[64,64], index: 4, kind: input, shape index: {}]
  %s5 = inlined_call_operand.vmem [shape: f32[1,64], index: 5, kind: input, shape index: {}]
  %s6 = inlined_call_operand.hbm [shape: f32[64,128], index: 6, kind: input, shape index: {}]
  %s7 = inlined_call_operand.vmem [shape: f32[1,128], index: 7, kind: input, shape index: {}]
  %s8 = inlined_call_operand.hbm [shape: f32[8,128], index: 8, kind: output, shape index: {}]
  %s9 = sld [smem:[#allocation0]]
  $region50: #{tpu_custom_call.1} parent=0
    _
  %s11 = ssub.s32 1, %s9
  %s12 = scalar_select 0, %s11, %s9
  $region1: #{tpu_custom_call.1} parent=0
    #allocation3 [shape = 'u8[65536]{0}', space=vmem, size = 0x10000, scoped, tag = 'input window, operand 3, single buffered']
    #allocation4 [shape = 's32[1]{0}', space=sflag, size = 0x4, scoped, tag = 'scoped memory for tpu_custom_call.1']
    #allocation5 [shape = 's32[1]{0}', space=sflag, size = 0x4, scoped, tag = 'scoped memory for tpu_custom_call.1']
    #allocation6 [shape = 'u8[32768]{0}', space=vmem, size = 0x8000, scoped, tag = 'input window, operand 6, single buffered']
    #allocation7 [shape = 's32[1]{0}', space=sflag, size = 0x4, scoped, tag = 'scoped memory for tpu_custom_call.1']
    #allocation8 [shape = 'u8[4096]{0}', space=vmem, size = 0x1000, scoped, tag = 'output window, operand 0, single buffered']
    %13 = vsyncpa [#allocation4], 0
    %14 = vsyncpa [#allocation7], 0
    %15 = vsyncpa [#allocation5], 0
    // Predicated region
    $region2: #{tpu_custom_call.1} parent=1 // pred_check
      _
    $region3: #{tpu_custom_call.1} parent=1 // pred_check_branch
      %17 = sbr.rel (0) target = $region5
    $region4: #{tpu_custom_call.1} parent=1 // pred_region
      _
    $region5: #{tpu_custom_call.1} parent=1 // pred_fallthru
      _
    // Predicated region
    $region6: #{tpu_custom_call.1} parent=1 // pred_check
      _
    $region7: #{tpu_custom_call.1} parent=1 // pred_check_branch
      %19 = sbr.rel (0) target = $region9
    $region8: #{tpu_custom_call.1} parent=1 // pred_region
      _
    $region9: #{tpu_custom_call.1} parent=1 // pred_fallthru
      _
    // Predicated region
    $region10: #{tpu_custom_call.1} parent=1 // pred_check
      _
    $region11: #{tpu_custom_call.1} parent=1 // pred_check_branch
      %21 = sbr.rel (0) target = $region13
    $region12: #{tpu_custom_call.1} parent=1 // pred_region
      _
    $region13: #{tpu_custom_call.1} parent=1 // pred_fallthru
      _
    // Predicated region
    $region14: #{tpu_custom_call.1} parent=1 // pred_check
      _
    $region15: #{tpu_custom_call.1} parent=1 // pred_check_branch
      %23 = sbr.rel (0) target = $region17
    $region16: #{tpu_custom_call.1} parent=1 // pred_region
      %s25 = ssub.s32 2048, 2048
      %26 = vsyncadd [#allocation4], %s25
      %s27 = sshll.u32 [#allocation3], 4
      %s28 = int_to_ptr.vmem [resolvable:$true] %s27
      %33 = dma.hbm_to_vmem [thread:$0]  %s3, 2048, %s28, [#allocation4], 256, 256, 16
    $region17: #{tpu_custom_call.1} parent=1 // pred_fallthru
      _
    // Predicated region
    $region18: #{tpu_custom_call.1} parent=1 // pred_check
      _
    $region19: #{tpu_custom_call.1} parent=1 // pred_check_branch
      %35 = sbr.rel (0) target = $region21
    $region20: #{tpu_custom_call.1} parent=1 // pred_region
      _
    $region21: #{tpu_custom_call.1} parent=1 // pred_fallthru
      _
    // Predicated region
    $region22: #{tpu_custom_call.1} parent=1 // pred_check
      _
    $region23: #{tpu_custom_call.1} parent=1 // pred_check_branch
      %37 = sbr.rel (0) target = $region25
    $region24: #{tpu_custom_call.1} parent=1 // pred_region
      _
    $region25: #{tpu_custom_call.1} parent=1 // pred_fallthru
      _
    // Predicated region
    $region26: #{tpu_custom_call.1} parent=1 // pred_check
      _
    $region27: #{tpu_custom_call.1} parent=1 // pred_check_branch
      %39 = sbr.rel (0) target = $region29
    $region28: #{tpu_custom_call.1} parent=1 // pred_region
      %s41 = ssub.s32 1024, 1024
      %42 = vsyncadd [#allocation7], %s41
      %s43 = sshll.u32 [#allocation6], 4
      %s44 = int_to_ptr.vmem [resolvable:$true] %s43
      %49 = dma.hbm_to_vmem [thread:$0]  %s6, 1024, %s44, [#allocation7], 128, 128, 8
    $region29: #{tpu_custom_call.1} parent=1 // pred_fallthru
      _
    // Predicated region
    $region30: #{tpu_custom_call.1} parent=1 // pred_check
      _
    $region31: #{tpu_custom_call.1} parent=1 // pred_check_branch
      %51 = sbr.rel (0) target = $region33
    $region32: #{tpu_custom_call.1} parent=1 // pred_region
      _
    $region33: #{tpu_custom_call.1} parent=1 // pred_fallthru
      _
    // Predicated region
    $region34: #{tpu_custom_call.1} parent=1 // pred_check
      _
    $region35: #{tpu_custom_call.1} parent=1 // pred_check_branch
      %53 = sbr.rel (0) target = $region37
    $region36: #{tpu_custom_call.1} parent=1 // pred_region
      %54 = dma.done [#allocation4], 2048
    $region37: #{tpu_custom_call.1} parent=1 // pred_fallthru
      _
    // Predicated region
    $region38: #{tpu_custom_call.1} parent=1 // pred_check
      _
    $region39: #{tpu_custom_call.1} parent=1 // pred_check_branch
      %56 = sbr.rel (0) target = $region41
    $region40: #{tpu_custom_call.1} parent=1 // pred_region
      %57 = dma.done [#allocation7], 1024
    $region41: #{tpu_custom_call.1} parent=1 // pred_fallthru
      _
    %v58 = vld [vmem:[%s0] sm:$0xff]
    %v59 = vld [vmem:[%s0 + $0x8] sm:$0xff]
    %v60 = vld [vmem:[%s0 + $0x10] sm:$0xff]
    %v61 = vld [vmem:[%s0 + $0x18] sm:$0xff]
    %v62 = vld [vmem:[%s0 + $0x20] sm:$0xff]
    %v63 = vld [vmem:[%s0 + $0x28] sm:$0xff]
    %v64 = vld [vmem:[%s0 + $0x30] sm:$0xff]
    %v65 = vld [vmem:[%s0 + $0x38] sm:$0xff]
    %v66 = vld [vmem:[%s1] sm:$0xff]
    %v67 = vld [vmem:[%s1 + $0x8] sm:$0xff]
    %v68 = vld [vmem:[%s2] sm:$0x3]
    %v70 = vlaneseq
    %v71 = vshrl.u32 %v70, 7
    %v72 = vsub.s32 0, %v71
    %v73 = vrot.slane %v68, %v72
    %v74 = vlaneseq
    %v75 = vshrl.u32 %v74, 7
    %v76 = vsub.s32 1, %v75
    %v77 = vrot.slane %v68, %v76
    %vm80 = vcmask 64512
    %v82 = vsel %vm80, %v58, 0
    %v85 = vsel %vm80, %v59, 0
    %v88 = vsel %vm80, %v60, 0
    %v91 = vsel %vm80, %v61, 0
    %v94 = vsel %vm80, %v62, 0
    %v97 = vsel %vm80, %v63, 0
    %v100 = vsel %vm80, %v64, 0
    %v103 = vsel %vm80, %v65, 0
    %105 = vmatprep.subr.mxu0 %v67
    %106 = vmatpush1.msra.mxu0 %v66
    %107 = vmatprep.subr.mxu0 0.0
    %108 = vmatpush1.msra.mxu0 0.0
    %109 = vmatprep.subr.mxu0 0.0
    %110 = vmatpush1.msra.mxu0 0.0
    %111 = vmatprep.subr.mxu0 0.0
    %112 = vmatpush1.msra.mxu0 0.0
    %113 = vmatprep.subr.mxu0 0.0
    %114 = vmatpush1.msra.mxu0 0.0
    %115 = vmatprep.subr.mxu0 0.0
    %116 = vmatpush1.msra.mxu0 0.0
    %117 = vmatprep.subr.mxu0 0.0
    %118 = vmatpush1.msra.mxu0 0.0
    %119 = vmatprep.subr.mxu0 0.0
    %120 = vmatpush1.msra.mxu0 0.0
    %121 = vmatprep.subr.mxu0 0.0
    %122 = vmatpush1.msra.mxu0 0.0
    %123 = vmatprep.subr.mxu0 0.0
    %124 = vmatpush1.msra.mxu0 0.0
    %125 = vmatprep.subr.mxu0 0.0
    %126 = vmatpush1.msra.mxu0 0.0
    %127 = vmatprep.subr.mxu0 0.0
    %128 = vmatpush1.msra.mxu0 0.0
    %129 = vmatprep.subr.mxu0 0.0
    %130 = vmatpush1.msra.mxu0 0.0
    %131 = vmatprep.subr.mxu0 0.0
    %132 = vmatpush1.msra.mxu0 0.0
    %133 = vmatprep.subr.mxu0 0.0
    %134 = vmatpush1.msra.mxu0 0.0
    %135 = vmatprep.subr.mxu0 0.0
    %136 = vmatpush1.msra.mxu0 0.0
    %137 = vmatprep.subr.mxu0 0.0
    %138 = vmatpush1.msra.mxu0 0.0
    %139 = vmatprep.subr.mxu0 0.0
    %140 = vmatpush1.msra.mxu0 0.0
    %141 = vmatprep.subr.mxu0 0.0
    %142 = vmatpush1.msra.mxu0 0.0
    %143 = vmatprep.subr.mxu0 0.0
    %144 = vmatpush1.msra.mxu0 0.0
    %145 = vmatprep.subr.mxu0 0.0
    %146 = vmatpush1.msra.mxu0 0.0
    %147 = vmatprep.subr.mxu0 0.0
    %148 = vmatpush1.msra.mxu0 0.0
    %149 = vmatprep.subr.mxu0 0.0
    %150 = vmatpush1.msra.mxu0 0.0
    %151 = vmatprep.subr.mxu0 0.0
    %152 = vmatpush1.msra.mxu0 0.0
    %153 = vmatprep.subr.mxu0 0.0
    %154 = vmatpush1.msra.mxu0 0.0
    %155 = vmatprep.subr.mxu0 0.0
    %156 = vmatpush1.msra.mxu0 0.0
    %157 = vmatprep.subr.mxu0 0.0
    %158 = vmatpush1.msra.mxu0 0.0
    %159 = vmatprep.subr.mxu0 0.0
    %160 = vmatpush1.msra.mxu0 0.0
    %161 = vmatprep.subr.mxu0 0.0
    %162 = vmatpush1.msra.mxu0 0.0
    %163 = vmatprep.subr.mxu0 0.0
    %164 = vmatpush1.msra.mxu0 0.0
    %165 = vmatprep.subr.mxu0 0.0
    %166 = vmatpush1.msra.mxu0 0.0
    %167 = vmatprep.subr.mxu0 0.0
    %168 = vmatpush1.msra.mxu0 0.0
    %169 = vmatprep.mubr.f32.mxu0 0.0
    %170 = vmatmul.mubr.f32.gmra.mrb[0].mxu0 %v82
    %v171 = vpop.f32.mrb[0].mxu0
    %v172 = vadd.f32 %v73, %v171
    %v173 = vpop.f32.mrb[0].mxu0
    %v174 = vadd.f32 %v77, %v173
    %175 = vmatprep.mubr.f32.mxu0 0.0
    %176 = vmatmul.mubr.f32.gmra.mrb[0].mxu0 %v85
    %v177 = vpop.f32.mrb[0].mxu0
    %v178 = vadd.f32 %v73, %v177
    %v179 = vpop.f32.mrb[0].mxu0
    %v180 = vadd.f32 %v77, %v179
    %181 = vmatprep.mubr.f32.mxu0 0.0
    %182 = vmatmul.mubr.f32.gmra.mrb[0].mxu0 %v88
    %v183 = vpop.f32.mrb[0].mxu0
    %v184 = vadd.f32 %v73, %v183
    %v185 = vpop.f32.mrb[0].mxu0
    %v186 = vadd.f32 %v77, %v185
    %187 = vmatprep.mubr.f32.mxu0 0.0
    %188 = vmatmul.mubr.f32.gmra.mrb[0].mxu0 %v91
    %v189 = vpop.f32.mrb[0].mxu0
    %v190 = vadd.f32 %v73, %v189
    %v191 = vpop.f32.mrb[0].mxu0
    %v192 = vadd.f32 %v77, %v191
    %193 = vmatprep.mubr.f32.mxu0 0.0
    %194 = vmatmul.mubr.f32.gmra.mrb[0].mxu0 %v94
    %v195 = vpop.f32.mrb[0].mxu0
    %v196 = vadd.f32 %v73, %v195
    %v197 = vpop.f32.mrb[0].mxu0
    %v198 = vadd.f32 %v77, %v197
    %199 = vmatprep.mubr.f32.mxu0 0.0
    %200 = vmatmul.mubr.f32.gmra.mrb[0].mxu0 %v97
    %v201 = vpop.f32.mrb[0].mxu0
    %v202 = vadd.f32 %v73, %v201
    %v203 = vpop.f32.mrb[0].mxu0
    %v204 = vadd.f32 %v77, %v203
    %205 = vmatprep.mubr.f32.mxu0 0.0
    %206 = vmatmul.mubr.f32.gmra.mrb[0].mxu0 %v100
    %v207 = vpop.f32.mrb[0].mxu0
    %v208 = vadd.f32 %v73, %v207
    %v209 = vpop.f32.mrb[0].mxu0
    %v210 = vadd.f32 %v77, %v209
    %211 = vmatprep.mubr.f32.mxu0 0.0
    %212 = vmatmul.mubr.f32.gmra.mrb[0].mxu0 %v103
    %v213 = vpop.f32.mrb[0].mxu0
    %v214 = vadd.f32 %v73, %v213
    %v215 = vpop.f32.mrb[0].mxu0
    %v216 = vadd.f32 %v77, %v215
    %217 = vdwg.mxu0
    %218 = vst [vmem:[#allocation2] sm:$0xff] %v172
    %219 = vst [vmem:[#allocation2 + $0x8] sm:$0xff] %v174
    %220 = vst [vmem:[#allocation2 + $0x10] sm:$0xff] %v178
    %221 = vst [vmem:[#allocation2 + $0x18] sm:$0xff] %v180
    %222 = vst [vmem:[#allocation2 + $0x20] sm:$0xff] %v184
    %223 = vst [vmem:[#allocation2 + $0x28] sm:$0xff] %v186
    %224 = vst [vmem:[#allocation2 + $0x30] sm:$0xff] %v190
    %225 = vst [vmem:[#allocation2 + $0x38] sm:$0xff] %v192
    %226 = vst [vmem:[#allocation2 + $0x40] sm:$0xff] %v196
    %227 = vst [vmem:[#allocation2 + $0x48] sm:$0xff] %v198
    %228 = vst [vmem:[#allocation2 + $0x50] sm:$0xff] %v202
    %229 = vst [vmem:[#allocation2 + $0x58] sm:$0xff] %v204
    %230 = vst [vmem:[#allocation2 + $0x60] sm:$0xff] %v208
    %231 = vst [vmem:[#allocation2 + $0x68] sm:$0xff] %v210
    %232 = vst [vmem:[#allocation2 + $0x70] sm:$0xff] %v214
    %233 = vst [vmem:[#allocation2 + $0x78] sm:$0xff] %v216
    %v234 = vld [vmem:[#allocation3] sm:$0xff]
    %v235 = vld [vmem:[#allocation3 + $0x8] sm:$0xff]
    %v236 = vld [vmem:[#allocation3 + $0x10] sm:$0xff]
    %v237 = vld [vmem:[#allocation3 + $0x18] sm:$0xff]
    %v238 = vld [vmem:[#allocation3 + $0x20] sm:$0xff]
    %v239 = vld [vmem:[#allocation3 + $0x28] sm:$0xff]
    %v240 = vld [vmem:[#allocation3 + $0x30] sm:$0xff]
    %v241 = vld [vmem:[#allocation3 + $0x38] sm:$0xff]
    %v242 = vld [vmem:[#allocation3 + $0x40] sm:$0xff]
    %v243 = vld [vmem:[#allocation3 + $0x48] sm:$0xff]
    %v244 = vld [vmem:[#allocation3 + $0x50] sm:$0xff]
    %v245 = vld [vmem:[#allocation3 + $0x58] sm:$0xff]
    %v246 = vld [vmem:[#allocation3 + $0x60] sm:$0xff]
    %v247 = vld [vmem:[#allocation3 + $0x68] sm:$0xff]
    %v248 = vld [vmem:[#allocation3 + $0x70] sm:$0xff]
    %v249 = vld [vmem:[#allocation3 + $0x78] sm:$0xff]
    %v250 = vld [vmem:[#allocation2] sm:$0xff]
    %v251 = vld [vmem:[#allocation2 + $0x8] sm:$0xff]
    %vm252 = vcmask 523264
    %v254 = vsel %vm252, 0.0, 0
    %256 = vmatprep.subr.mxu0 %v235
    %257 = vmatpush1.msra.mxu0 %v234
    %258 = vmatprep.subr.mxu0 %v237
    %259 = vmatpush1.msra.mxu0 %v236
    %260 = vmatprep.subr.mxu0 %v239
    %261 = vmatpush1.msra.mxu0 %v238
    %262 = vmatprep.subr.mxu0 %v241
    %263 = vmatpush1.msra.mxu0 %v240
    %264 = vmatprep.subr.mxu0 %v243
    %265 = vmatpush1.msra.mxu0 %v242
    %266 = vmatprep.subr.mxu0 %v245
    %267 = vmatpush1.msra.mxu0 %v244
    %268 = vmatprep.subr.mxu0 %v247
    %269 = vmatpush1.msra.mxu0 %v246
    %270 = vmatprep.subr.mxu0 %v249
    %271 = vmatpush1.msra.mxu0 %v248
    %272 = vmatprep.subr.mxu0 0.0
    %273 = vmatpush1.msra.mxu0 0.0
    %274 = vmatprep.subr.mxu0 0.0
    %275 = vmatpush1.msra.mxu0 0.0
    %276 = vmatprep.subr.mxu0 0.0
    %277 = vmatpush1.msra.mxu0 0.0
    %278 = vmatprep.subr.mxu0 0.0
    %279 = vmatpush1.msra.mxu0 0.0
    %280 = vmatprep.subr.mxu0 0.0
    %281 = vmatpush1.msra.mxu0 0.0
    %282 = vmatprep.subr.mxu0 0.0
    %283 = vmatpush1.msra.mxu0 0.0
    %284 = vmatprep.subr.mxu0 0.0
    %285 = vmatpush1.msra.mxu0 0.0
    %286 = vmatprep.subr.mxu0 0.0
    %287 = vmatpush1.msra.mxu0 0.0
    %288 = vmatprep.subr.mxu0 0.0
    %289 = vmatpush1.msra.mxu0 0.0
    %290 = vmatprep.subr.mxu0 0.0
    %291 = vmatpush1.msra.mxu0 0.0
    %292 = vmatprep.subr.mxu0 0.0
    %293 = vmatpush1.msra.mxu0 0.0
    %294 = vmatprep.subr.mxu0 0.0
    %295 = vmatpush1.msra.mxu0 0.0
    %296 = vmatprep.subr.mxu0 0.0
    %297 = vmatpush1.msra.mxu0 0.0
    %298 = vmatprep.subr.mxu0 0.0
    %299 = vmatpush1.msra.mxu0 0.0
    %300 = vmatprep.subr.mxu0 0.0
    %301 = vmatpush1.msra.mxu0 0.0
    %302 = vmatprep.subr.mxu0 0.0
    %303 = vmatpush1.msra.mxu0 0.0
    %304 = vmatprep.subr.mxu0 0.0
    %305 = vmatpush1.msra.mxu0 0.0
    %306 = vmatprep.subr.mxu0 0.0
    %307 = vmatpush1.msra.mxu0 0.0
    %308 = vmatprep.subr.mxu0 0.0
    %309 = vmatpush1.msra.mxu0 0.0
    %310 = vmatprep.subr.mxu0 0.0
    %311 = vmatpush1.msra.mxu0 0.0
    %312 = vmatprep.subr.mxu0 0.0
    %313 = vmatpush1.msra.mxu0 0.0
    %314 = vmatprep.subr.mxu0 0.0
    %315 = vmatpush1.msra.mxu0 0.0
    %316 = vmatprep.subr.mxu0 0.0
    %317 = vmatpush1.msra.mxu0 0.0
    %318 = vmatprep.subr.mxu0 0.0
    %319 = vmatpush1.msra.mxu0 0.0
    %320 = vmatprep.mubr.f32.mxu0 0.0
    %321 = vmatmul.mubr.f32.gmra.mrb[0].mxu0 %v254
    %v322 = vpop.f32.mrb[0].mxu0
    %v323 = vadd.f32 0.0, %v322
    %v324 = vpop.f32.mrb[0].mxu0
    %v325 = vadd.f32 0.0, %v324
    %326 = vdwg.mxu0
    %v327 = vadd.f32 %v250, %v323
    %v328 = vadd.f32 %v251, %v325
    %v329 = vtanh.pop %v327
    %v330 = vtanh.pop %v328
    %v331 = vmul.f32 %v329, 0.5
    %v332 = vmul.f32 %v330, 0.5
    %v333 = vadd.f32 %v331, 0.5
    %v334 = vadd.f32 %v332, 0.5
    %v335 = vmul.f32 %v333, 0.0
    %337 = vrot.lane.b32.xlu0 %v330, 64
    %v338 = vpop.permute.xlu0 %337
    %v340 = vmul.f32 %v333, %v338
    %342 = vrot.lane.b32.xlu0 %v340, 64
    %v343 = vpop.permute.xlu0 %342
    %v345 = vadd.f32 %v335, %v343
    %v346 = vtanh.pop %v345
    %348 = vrot.lane.b32.xlu0 %v346, 64
    %v349 = vpop.permute.xlu0 %348
    %v351 = vmul.f32 %v334, %v349
    %s352 = scalar_lea.vmem [#allocation2], 16
    %v353 = vld [vmem:[%s352] sm:$0xff]
    %v354 = vld [vmem:[%s352 + $0x8] sm:$0xff]
    %v356 = vsel %vm252, %v351, 0
    %358 = vmatprep.subr.mxu0 %v235
    %359 = vmatpush1.msra.mxu0 %v234
    %360 = vmatprep.subr.mxu0 %v237
    %361 = vmatpush1.msra.mxu0 %v236
    %362 = vmatprep.subr.mxu0 %v239
    %363 = vmatpush1.msra.mxu0 %v238
    %364 = vmatprep.subr.mxu0 %v241
    %365 = vmatpush1.msra.mxu0 %v240
    %366 = vmatprep.subr.mxu0 %v243
    %367 = vmatpush1.msra.mxu0 %v242
    %368 = vmatprep.subr.mxu0 %v245
    %369 = vmatpush1.msra.mxu0 %v244
    %370 = vmatprep.subr.mxu0 %v247
    %371 = vmatpush1.msra.mxu0 %v246
    %372 = vmatprep.subr.mxu0 %v249
    %373 = vmatpush1.msra.mxu0 %v248
    %374 = vmatprep.subr.mxu0 0.0
    %375 = vmatpush1.msra.mxu0 0.0
    %376 = vmatprep.subr.mxu0 0.0
    %377 = vmatpush1.msra.mxu0 0.0
    %378 = vmatprep.subr.mxu0 0.0
    %379 = vmatpush1.msra.mxu0 0.0
    %380 = vmatprep.subr.mxu0 0.0
    %381 = vmatpush1.msra.mxu0 0.0
    %382 = vmatprep.subr.mxu0 0.0
    %383 = vmatpush1.msra.mxu0 0.0
    %384 = vmatprep.subr.mxu0 0.0
    %385 = vmatpush1.msra.mxu0 0.0
    %386 = vmatprep.subr.mxu0 0.0
    %387 = vmatpush1.msra.mxu0 0.0
    %388 = vmatprep.subr.mxu0 0.0
    %389 = vmatpush1.msra.mxu0 0.0
    %390 = vmatprep.subr.mxu0 0.0
    %391 = vmatpush1.msra.mxu0 0.0
    %392 = vmatprep.subr.mxu0 0.0
    %393 = vmatpush1.msra.mxu0 0.0
    %394 = vmatprep.subr.mxu0 0.0
    %395 = vmatpush1.msra.mxu0 0.0
    %396 = vmatprep.subr.mxu0 0.0
    %397 = vmatpush1.msra.mxu0 0.0
    %398 = vmatprep.subr.mxu0 0.0
    %399 = vmatpush1.msra.mxu0 0.0
    %400 = vmatprep.subr.mxu0 0.0
    %401 = vmatpush1.msra.mxu0 0.0
    %402 = vmatprep.subr.mxu0 0.0
    %403 = vmatpush1.msra.mxu0 0.0
    %404 = vmatprep.subr.mxu0 0.0
    %405 = vmatpush1.msra.mxu0 0.0
    %406 = vmatprep.subr.mxu0 0.0
    %407 = vmatpush1.msra.mxu0 0.0
    %408 = vmatprep.subr.mxu0 0.0
    %409 = vmatpush1.msra.mxu0 0.0
    %410 = vmatprep.subr.mxu0 0.0
    %411 = vmatpush1.msra.mxu0 0.0
    %412 = vmatprep.subr.mxu0 0.0
    %413 = vmatpush1.msra.mxu0 0.0
    %414 = vmatprep.subr.mxu0 0.0
    %415 = vmatpush1.msra.mxu0 0.0
    %416 = vmatprep.subr.mxu0 0.0
    %417 = vmatpush1.msra.mxu0 0.0
    %418 = vmatprep.subr.mxu0 0.0
    %419 = vmatpush1.msra.mxu0 0.0
    %420 = vmatprep.subr.mxu0 0.0
    %421 = vmatpush1.msra.mxu0 0.0
    %422 = vmatprep.mubr.f32.mxu0 0.0
    %423 = vmatmul.mubr.f32.gmra.mrb[0].mxu0 %v356
    %v424 = vpop.f32.mrb[0].mxu0
    %v425 = vadd.f32 0.0, %v424
    %v426 = vpop.f32.mrb[0].mxu0
    %v427 = vadd.f32 0.0, %v426
    %428 = vdwg.mxu0
    %v429 = vadd.f32 %v353, %v425
    %v430 = vadd.f32 %v354, %v427
    %v431 = vtanh.pop %v429
    %v432 = vtanh.pop %v430
    %v433 = vmul.f32 %v431, 0.5
    %v434 = vmul.f32 %v432, 0.5
    %v435 = vadd.f32 %v433, 0.5
    %v436 = vadd.f32 %v434, 0.5
    %v437 = vmul.f32 %v435, %v345
    %439 = vrot.lane.b32.xlu0 %v432, 64
    %v440 = vpop.permute.xlu0 %439
    %v442 = vmul.f32 %v435, %v440
    %444 = vrot.lane.b32.xlu0 %v442, 64
    %v445 = vpop.permute.xlu0 %444
    %v447 = vadd.f32 %v437, %v445
    %v448 = vtanh.pop %v447
    %450 = vrot.lane.b32.xlu0 %v448, 64
    %v451 = vpop.permute.xlu0 %450
    %v453 = vmul.f32 %v436, %v451
    %s454 = scalar_lea.vmem [#allocation2], 32
    %v455 = vld [vmem:[%s454] sm:$0xff]
    %v456 = vld [vmem:[%s454 + $0x8] sm:$0xff]
    %v458 = vsel %vm252, %v453, 0
    %460 = vmatprep.subr.mxu0 %v235
    %461 = vmatpush1.msra.mxu0 %v234
    %462 = vmatprep.subr.mxu0 %v237
    %463 = vmatpush1.msra.mxu0 %v236
    %464 = vmatprep.subr.mxu0 %v239
    %465 = vmatpush1.msra.mxu0 %v238
    %466 = vmatprep.subr.mxu0 %v241
    %467 = vmatpush1.msra.mxu0 %v240
    %468 = vmatprep.subr.mxu0 %v243
    %469 = vmatpush1.msra.mxu0 %v242
    %470 = vmatprep.subr.mxu0 %v245
    %471 = vmatpush1.msra.mxu0 %v244
    %472 = vmatprep.subr.mxu0 %v247
    %473 = vmatpush1.msra.mxu0 %v246
    %474 = vmatprep.subr.mxu0 %v249
    %475 = vmatpush1.msra.mxu0 %v248
    %476 = vmatprep.subr.mxu0 0.0
    %477 = vmatpush1.msra.mxu0 0.0
    %478 = vmatprep.subr.mxu0 0.0
    %479 = vmatpush1.msra.mxu0 0.0
    %480 = vmatprep.subr.mxu0 0.0
    %481 = vmatpush1.msra.mxu0 0.0
    %482 = vmatprep.subr.mxu0 0.0
    %483 = vmatpush1.msra.mxu0 0.0
    %484 = vmatprep.subr.mxu0 0.0
    %485 = vmatpush1.msra.mxu0 0.0
    %486 = vmatprep.subr.mxu0 0.0
    %487 = vmatpush1.msra.mxu0 0.0
    %488 = vmatprep.subr.mxu0 0.0
    %489 = vmatpush1.msra.mxu0 0.0
    %490 = vmatprep.subr.mxu0 0.0
    %491 = vmatpush1.msra.mxu0 0.0
    %492 = vmatprep.subr.mxu0 0.0
    %493 = vmatpush1.msra.mxu0 0.0
    %494 = vmatprep.subr.mxu0 0.0
    %495 = vmatpush1.msra.mxu0 0.0
    %496 = vmatprep.subr.mxu0 0.0
    %497 = vmatpush1.msra.mxu0 0.0
    %498 = vmatprep.subr.mxu0 0.0
    %499 = vmatpush1.msra.mxu0 0.0
    %500 = vmatprep.subr.mxu0 0.0
    %501 = vmatpush1.msra.mxu0 0.0
    %502 = vmatprep.subr.mxu0 0.0
    %503 = vmatpush1.msra.mxu0 0.0
    %504 = vmatprep.subr.mxu0 0.0
    %505 = vmatpush1.msra.mxu0 0.0
    %506 = vmatprep.subr.mxu0 0.0
    %507 = vmatpush1.msra.mxu0 0.0
    %508 = vmatprep.subr.mxu0 0.0
    %509 = vmatpush1.msra.mxu0 0.0
    %510 = vmatprep.subr.mxu0 0.0
    %511 = vmatpush1.msra.mxu0 0.0
    %512 = vmatprep.subr.mxu0 0.0
    %513 = vmatpush1.msra.mxu0 0.0
    %514 = vmatprep.subr.mxu0 0.0
    %515 = vmatpush1.msra.mxu0 0.0
    %516 = vmatprep.subr.mxu0 0.0
    %517 = vmatpush1.msra.mxu0 0.0
    %518 = vmatprep.subr.mxu0 0.0
    %519 = vmatpush1.msra.mxu0 0.0
    %520 = vmatprep.subr.mxu0 0.0
    %521 = vmatpush1.msra.mxu0 0.0
    %522 = vmatprep.subr.mxu0 0.0
    %523 = vmatpush1.msra.mxu0 0.0
    %524 = vmatprep.mubr.f32.mxu0 0.0
    %525 = vmatmul.mubr.f32.gmra.mrb[0].mxu0 %v458
    %v526 = vpop.f32.mrb[0].mxu0
    %v527 = vadd.f32 0.0, %v526
    %v528 = vpop.f32.mrb[0].mxu0
    %v529 = vadd.f32 0.0, %v528
    %530 = vdwg.mxu0
    %v531 = vadd.f32 %v455, %v527
    %v532 = vadd.f32 %v456, %v529
    %v533 = vtanh.pop %v531
    %v534 = vtanh.pop %v532
    %v535 = vmul.f32 %v533, 0.5
    %v536 = vmul.f32 %v534, 0.5
    %v537 = vadd.f32 %v535, 0.5
    %v538 = vadd.f32 %v536, 0.5
    %v539 = vmul.f32 %v537, %v447
    %541 = vrot.lane.b32.xlu0 %v534, 64
    %v542 = vpop.permute.xlu0 %541
    %v544 = vmul.f32 %v537, %v542
    %546 = vrot.lane.b32.xlu0 %v544, 64
    %v547 = vpop.permute.xlu0 %546
    %v549 = vadd.f32 %v539, %v547
    %v550 = vtanh.pop %v549
    %552 = vrot.lane.b32.xlu0 %v550, 64
    %v553 = vpop.permute.xlu0 %552
    %v555 = vmul.f32 %v538, %v553
    %s556 = scalar_lea.vmem [#allocation2], 48
    %v557 = vld [vmem:[%s556] sm:$0xff]
    %v558 = vld [vmem:[%s556 + $0x8] sm:$0xff]
    %v560 = vsel %vm252, %v555, 0
    %562 = vmatprep.subr.mxu0 %v235
    %563 = vmatpush1.msra.mxu0 %v234
    %564 = vmatprep.subr.mxu0 %v237
    %565 = vmatpush1.msra.mxu0 %v236
    %566 = vmatprep.subr.mxu0 %v239
    %567 = vmatpush1.msra.mxu0 %v238
    %568 = vmatprep.subr.mxu0 %v241
    %569 = vmatpush1.msra.mxu0 %v240
    %570 = vmatprep.subr.mxu0 %v243
    %571 = vmatpush1.msra.mxu0 %v242
    %572 = vmatprep.subr.mxu0 %v245
    %573 = vmatpush1.msra.mxu0 %v244
    %574 = vmatprep.subr.mxu0 %v247
    %575 = vmatpush1.msra.mxu0 %v246
    %576 = vmatprep.subr.mxu0 %v249
    %577 = vmatpush1.msra.mxu0 %v248
    %578 = vmatprep.subr.mxu0 0.0
    %579 = vmatpush1.msra.mxu0 0.0
    %580 = vmatprep.subr.mxu0 0.0
    %581 = vmatpush1.msra.mxu0 0.0
    %582 = vmatprep.subr.mxu0 0.0
    %583 = vmatpush1.msra.mxu0 0.0
    %584 = vmatprep.subr.mxu0 0.0
    %585 = vmatpush1.msra.mxu0 0.0
    %586 = vmatprep.subr.mxu0 0.0
    %587 = vmatpush1.msra.mxu0 0.0
    %588 = vmatprep.subr.mxu0 0.0
    %589 = vmatpush1.msra.mxu0 0.0
    %590 = vmatprep.subr.mxu0 0.0
    %591 = vmatpush1.msra.mxu0 0.0
    %592 = vmatprep.subr.mxu0 0.0
    %593 = vmatpush1.msra.mxu0 0.0
    %594 = vmatprep.subr.mxu0 0.0
    %595 = vmatpush1.msra.mxu0 0.0
    %596 = vmatprep.subr.mxu0 0.0
    %597 = vmatpush1.msra.mxu0 0.0
    %598 = vmatprep.subr.mxu0 0.0
    %599 = vmatpush1.msra.mxu0 0.0
    %600 = vmatprep.subr.mxu0 0.0
    %601 = vmatpush1.msra.mxu0 0.0
    %602 = vmatprep.subr.mxu0 0.0
    %603 = vmatpush1.msra.mxu0 0.0
    %604 = vmatprep.subr.mxu0 0.0
    %605 = vmatpush1.msra.mxu0 0.0
    %606 = vmatprep.subr.mxu0 0.0
    %607 = vmatpush1.msra.mxu0 0.0
    %608 = vmatprep.subr.mxu0 0.0
    %609 = vmatpush1.msra.mxu0 0.0
    %610 = vmatprep.subr.mxu0 0.0
    %611 = vmatpush1.msra.mxu0 0.0
    %612 = vmatprep.subr.mxu0 0.0
    %613 = vmatpush1.msra.mxu0 0.0
    %614 = vmatprep.subr.mxu0 0.0
    %615 = vmatpush1.msra.mxu0 0.0
    %616 = vmatprep.subr.mxu0 0.0
    %617 = vmatpush1.msra.mxu0 0.0
    %618 = vmatprep.subr.mxu0 0.0
    %619 = vmatpush1.msra.mxu0 0.0
    %620 = vmatprep.subr.mxu0 0.0
    %621 = vmatpush1.msra.mxu0 0.0
    %622 = vmatprep.subr.mxu0 0.0
    %623 = vmatpush1.msra.mxu0 0.0
    %624 = vmatprep.subr.mxu0 0.0
    %625 = vmatpush1.msra.mxu0 0.0
    %626 = vmatprep.mubr.f32.mxu0 0.0
    %627 = vmatmul.mubr.f32.gmra.mrb[0].mxu0 %v560
    %v628 = vpop.f32.mrb[0].mxu0
    %v629 = vadd.f32 0.0, %v628
    %v630 = vpop.f32.mrb[0].mxu0
    %v631 = vadd.f32 0.0, %v630
    %632 = vdwg.mxu0
    %v633 = vadd.f32 %v557, %v629
    %v634 = vadd.f32 %v558, %v631
    %v635 = vtanh.pop %v633
    %v636 = vtanh.pop %v634
    %v637 = vmul.f32 %v635, 0.5
    %v638 = vmul.f32 %v636, 0.5
    %v639 = vadd.f32 %v637, 0.5
    %v640 = vadd.f32 %v638, 0.5
    %v641 = vmul.f32 %v639, %v549
    %643 = vrot.lane.b32.xlu0 %v636, 64
    %v644 = vpop.permute.xlu0 %643
    %v646 = vmul.f32 %v639, %v644
    %648 = vrot.lane.b32.xlu0 %v646, 64
    %v649 = vpop.permute.xlu0 %648
    %v651 = vadd.f32 %v641, %v649
    %v652 = vtanh.pop %v651
    %654 = vrot.lane.b32.xlu0 %v652, 64
    %v655 = vpop.permute.xlu0 %654
    %v657 = vmul.f32 %v640, %v655
    %s658 = scalar_lea.vmem [#allocation2], 64
    %v659 = vld [vmem:[%s658] sm:$0xff]
    %v660 = vld [vmem:[%s658 + $0x8] sm:$0xff]
    %v662 = vsel %vm252, %v657, 0
    %664 = vmatprep.subr.mxu0 %v235
    %665 = vmatpush1.msra.mxu0 %v234
    %666 = vmatprep.subr.mxu0 %v237
    %667 = vmatpush1.msra.mxu0 %v236
    %668 = vmatprep.subr.mxu0 %v239
    %669 = vmatpush1.msra.mxu0 %v238
    %670 = vmatprep.subr.mxu0 %v241
    %671 = vmatpush1.msra.mxu0 %v240
    %672 = vmatprep.subr.mxu0 %v243
    %673 = vmatpush1.msra.mxu0 %v242
    %674 = vmatprep.subr.mxu0 %v245
    %675 = vmatpush1.msra.mxu0 %v244
    %676 = vmatprep.subr.mxu0 %v247
    %677 = vmatpush1.msra.mxu0 %v246
    %678 = vmatprep.subr.mxu0 %v249
    %679 = vmatpush1.msra.mxu0 %v248
    %680 = vmatprep.subr.mxu0 0.0
    %681 = vmatpush1.msra.mxu0 0.0
    %682 = vmatprep.subr.mxu0 0.0
    %683 = vmatpush1.msra.mxu0 0.0
    %684 = vmatprep.subr.mxu0 0.0
    %685 = vmatpush1.msra.mxu0 0.0
    %686 = vmatprep.subr.mxu0 0.0
    %687 = vmatpush1.msra.mxu0 0.0
    %688 = vmatprep.subr.mxu0 0.0
    %689 = vmatpush1.msra.mxu0 0.0
    %690 = vmatprep.subr.mxu0 0.0
    %691 = vmatpush1.msra.mxu0 0.0
    %692 = vmatprep.subr.mxu0 0.0
    %693 = vmatpush1.msra.mxu0 0.0
    %694 = vmatprep.subr.mxu0 0.0
    %695 = vmatpush1.msra.mxu0 0.0
    %696 = vmatprep.subr.mxu0 0.0
    %697 = vmatpush1.msra.mxu0 0.0
    %698 = vmatprep.subr.mxu0 0.0
    %699 = vmatpush1.msra.mxu0 0.0
    %700 = vmatprep.subr.mxu0 0.0
    %701 = vmatpush1.msra.mxu0 0.0
    %702 = vmatprep.subr.mxu0 0.0
    %703 = vmatpush1.msra.mxu0 0.0
    %704 = vmatprep.subr.mxu0 0.0
    %705 = vmatpush1.msra.mxu0 0.0
    %706 = vmatprep.subr.mxu0 0.0
    %707 = vmatpush1.msra.mxu0 0.0
    %708 = vmatprep.subr.mxu0 0.0
    %709 = vmatpush1.msra.mxu0 0.0
    %710 = vmatprep.subr.mxu0 0.0
    %711 = vmatpush1.msra.mxu0 0.0
    %712 = vmatprep.subr.mxu0 0.0
    %713 = vmatpush1.msra.mxu0 0.0
    %714 = vmatprep.subr.mxu0 0.0
    %715 = vmatpush1.msra.mxu0 0.0
    %716 = vmatprep.subr.mxu0 0.0
    %717 = vmatpush1.msra.mxu0 0.0
    %718 = vmatprep.subr.mxu0 0.0
    %719 = vmatpush1.msra.mxu0 0.0
    %720 = vmatprep.subr.mxu0 0.0
    %721 = vmatpush1.msra.mxu0 0.0
    %722 = vmatprep.subr.mxu0 0.0
    %723 = vmatpush1.msra.mxu0 0.0
    %724 = vmatprep.subr.mxu0 0.0
    %725 = vmatpush1.msra.mxu0 0.0
    %726 = vmatprep.subr.mxu0 0.0
    %727 = vmatpush1.msra.mxu0 0.0
    %728 = vmatprep.mubr.f32.mxu0 0.0
    %729 = vmatmul.mubr.f32.gmra.mrb[0].mxu0 %v662
    %v730 = vpop.f32.mrb[0].mxu0
    %v731 = vadd.f32 0.0, %v730
    %v732 = vpop.f32.mrb[0].mxu0
    %v733 = vadd.f32 0.0, %v732
    %734 = vdwg.mxu0
    %v735 = vadd.f32 %v659, %v731
    %v736 = vadd.f32 %v660, %v733
    %v737 = vtanh.pop %v735
    %v738 = vtanh.pop %v736
    %v739 = vmul.f32 %v737, 0.5
    %v740 = vmul.f32 %v738, 0.5
    %v741 = vadd.f32 %v739, 0.5
    %v742 = vadd.f32 %v740, 0.5
    %v743 = vmul.f32 %v741, %v651
    %745 = vrot.lane.b32.xlu0 %v738, 64
    %v746 = vpop.permute.xlu0 %745
    %v748 = vmul.f32 %v741, %v746
    %750 = vrot.lane.b32.xlu0 %v748, 64
    %v751 = vpop.permute.xlu0 %750
    %v753 = vadd.f32 %v743, %v751
    %v754 = vtanh.pop %v753
    %756 = vrot.lane.b32.xlu0 %v754, 64
    %v757 = vpop.permute.xlu0 %756
    %v759 = vmul.f32 %v742, %v757
    %s760 = scalar_lea.vmem [#allocation2], 80
    %v761 = vld [vmem:[%s760] sm:$0xff]
    %v762 = vld [vmem:[%s760 + $0x8] sm:$0xff]
    %v764 = vsel %vm252, %v759, 0
    %766 = vmatprep.subr.mxu0 %v235
    %767 = vmatpush1.msra.mxu0 %v234
    %768 = vmatprep.subr.mxu0 %v237
    %769 = vmatpush1.msra.mxu0 %v236
    %770 = vmatprep.subr.mxu0 %v239
    %771 = vmatpush1.msra.mxu0 %v238
    %772 = vmatprep.subr.mxu0 %v241
    %773 = vmatpush1.msra.mxu0 %v240
    %774 = vmatprep.subr.mxu0 %v243
    %775 = vmatpush1.msra.mxu0 %v242
    %776 = vmatprep.subr.mxu0 %v245
    %777 = vmatpush1.msra.mxu0 %v244
    %778 = vmatprep.subr.mxu0 %v247
    %779 = vmatpush1.msra.mxu0 %v246
    %780 = vmatprep.subr.mxu0 %v249
    %781 = vmatpush1.msra.mxu0 %v248
    %782 = vmatprep.subr.mxu0 0.0
    %783 = vmatpush1.msra.mxu0 0.0
    %784 = vmatprep.subr.mxu0 0.0
    %785 = vmatpush1.msra.mxu0 0.0
    %786 = vmatprep.subr.mxu0 0.0
    %787 = vmatpush1.msra.mxu0 0.0
    %788 = vmatprep.subr.mxu0 0.0
    %789 = vmatpush1.msra.mxu0 0.0
    %790 = vmatprep.subr.mxu0 0.0
    %791 = vmatpush1.msra.mxu0 0.0
    %792 = vmatprep.subr.mxu0 0.0
    %793 = vmatpush1.msra.mxu0 0.0
    %794 = vmatprep.subr.mxu0 0.0
    %795 = vmatpush1.msra.mxu0 0.0
    %796 = vmatprep.subr.mxu0 0.0
    %797 = vmatpush1.msra.mxu0 0.0
    %798 = vmatprep.subr.mxu0 0.0
    %799 = vmatpush1.msra.mxu0 0.0
    %800 = vmatprep.subr.mxu0 0.0
    %801 = vmatpush1.msra.mxu0 0.0
    %802 = vmatprep.subr.mxu0 0.0
    %803 = vmatpush1.msra.mxu0 0.0
    %804 = vmatprep.subr.mxu0 0.0
    %805 = vmatpush1.msra.mxu0 0.0
    %806 = vmatprep.subr.mxu0 0.0
    %807 = vmatpush1.msra.mxu0 0.0
    %808 = vmatprep.subr.mxu0 0.0
    %809 = vmatpush1.msra.mxu0 0.0
    %810 = vmatprep.subr.mxu0 0.0
    %811 = vmatpush1.msra.mxu0 0.0
    %812 = vmatprep.subr.mxu0 0.0
    %813 = vmatpush1.msra.mxu0 0.0
    %814 = vmatprep.subr.mxu0 0.0
    %815 = vmatpush1.msra.mxu0 0.0
    %816 = vmatprep.subr.mxu0 0.0
    %817 = vmatpush1.msra.mxu0 0.0
    %818 = vmatprep.subr.mxu0 0.0
    %819 = vmatpush1.msra.mxu0 0.0
    %820 = vmatprep.subr.mxu0 0.0
    %821 = vmatpush1.msra.mxu0 0.0
    %822 = vmatprep.subr.mxu0 0.0
    %823 = vmatpush1.msra.mxu0 0.0
    %824 = vmatprep.subr.mxu0 0.0
    %825 = vmatpush1.msra.mxu0 0.0
    %826 = vmatprep.subr.mxu0 0.0
    %827 = vmatpush1.msra.mxu0 0.0
    %828 = vmatprep.subr.mxu0 0.0
    %829 = vmatpush1.msra.mxu0 0.0
    %830 = vmatprep.mubr.f32.mxu0 0.0
    %831 = vmatmul.mubr.f32.gmra.mrb[0].mxu0 %v764
    %v832 = vpop.f32.mrb[0].mxu0
    %v833 = vadd.f32 0.0, %v832
    %v834 = vpop.f32.mrb[0].mxu0
    %v835 = vadd.f32 0.0, %v834
    %836 = vdwg.mxu0
    %v837 = vadd.f32 %v761, %v833
    %v838 = vadd.f32 %v762, %v835
    %v839 = vtanh.pop %v837
    %v840 = vtanh.pop %v838
    %v841 = vmul.f32 %v839, 0.5
    %v842 = vmul.f32 %v840, 0.5
    %v843 = vadd.f32 %v841, 0.5
    %v844 = vadd.f32 %v842, 0.5
    %v845 = vmul.f32 %v843, %v753
    %847 = vrot.lane.b32.xlu0 %v840, 64
    %v848 = vpop.permute.xlu0 %847
    %v850 = vmul.f32 %v843, %v848
    %852 = vrot.lane.b32.xlu0 %v850, 64
    %v853 = vpop.permute.xlu0 %852
    %v855 = vadd.f32 %v845, %v853
    %v856 = vtanh.pop %v855
    %858 = vrot.lane.b32.xlu0 %v856, 64
    %v859 = vpop.permute.xlu0 %858
    %v861 = vmul.f32 %v844, %v859
    %s862 = scalar_lea.vmem [#allocation2], 96
    %v863 = vld [vmem:[%s862] sm:$0xff]
    %v864 = vld [vmem:[%s862 + $0x8] sm:$0xff]
    %v866 = vsel %vm252, %v861, 0
    %868 = vmatprep.subr.mxu0 %v235
    %869 = vmatpush1.msra.mxu0 %v234
    %870 = vmatprep.subr.mxu0 %v237
    %871 = vmatpush1.msra.mxu0 %v236
    %872 = vmatprep.subr.mxu0 %v239
    %873 = vmatpush1.msra.mxu0 %v238
    %874 = vmatprep.subr.mxu0 %v241
    %875 = vmatpush1.msra.mxu0 %v240
    %876 = vmatprep.subr.mxu0 %v243
    %877 = vmatpush1.msra.mxu0 %v242
    %878 = vmatprep.subr.mxu0 %v245
    %879 = vmatpush1.msra.mxu0 %v244
    %880 = vmatprep.subr.mxu0 %v247
    %881 = vmatpush1.msra.mxu0 %v246
    %882 = vmatprep.subr.mxu0 %v249
    %883 = vmatpush1.msra.mxu0 %v248
    %884 = vmatprep.subr.mxu0 0.0
    %885 = vmatpush1.msra.mxu0 0.0
    %886 = vmatprep.subr.mxu0 0.0
    %887 = vmatpush1.msra.mxu0 0.0
    %888 = vmatprep.subr.mxu0 0.0
    %889 = vmatpush1.msra.mxu0 0.0
    %890 = vmatprep.subr.mxu0 0.0
    %891 = vmatpush1.msra.mxu0 0.0
    %892 = vmatprep.subr.mxu0 0.0
    %893 = vmatpush1.msra.mxu0 0.0
    %894 = vmatprep.subr.mxu0 0.0
    %895 = vmatpush1.msra.mxu0 0.0
    %896 = vmatprep.subr.mxu0 0.0
    %897 = vmatpush1.msra.mxu0 0.0
    %898 = vmatprep.subr.mxu0 0.0
    %899 = vmatpush1.msra.mxu0 0.0
    %900 = vmatprep.subr.mxu0 0.0
    %901 = vmatpush1.msra.mxu0 0.0
    %902 = vmatprep.subr.mxu0 0.0
    %903 = vmatpush1.msra.mxu0 0.0
    %904 = vmatprep.subr.mxu0 0.0
    %905 = vmatpush1.msra.mxu0 0.0
    %906 = vmatprep.subr.mxu0 0.0
    %907 = vmatpush1.msra.mxu0 0.0
    %908 = vmatprep.subr.mxu0 0.0
    %909 = vmatpush1.msra.mxu0 0.0
    %910 = vmatprep.subr.mxu0 0.0
    %911 = vmatpush1.msra.mxu0 0.0
    %912 = vmatprep.subr.mxu0 0.0
    %913 = vmatpush1.msra.mxu0 0.0
    %914 = vmatprep.subr.mxu0 0.0
    %915 = vmatpush1.msra.mxu0 0.0
    %916 = vmatprep.subr.mxu0 0.0
    %917 = vmatpush1.msra.mxu0 0.0
    %918 = vmatprep.subr.mxu0 0.0
    %919 = vmatpush1.msra.mxu0 0.0
    %920 = vmatprep.subr.mxu0 0.0
    %921 = vmatpush1.msra.mxu0 0.0
    %922 = vmatprep.subr.mxu0 0.0
    %923 = vmatpush1.msra.mxu0 0.0
    %924 = vmatprep.subr.mxu0 0.0
    %925 = vmatpush1.msra.mxu0 0.0
    %926 = vmatprep.subr.mxu0 0.0
    %927 = vmatpush1.msra.mxu0 0.0
    %928 = vmatprep.subr.mxu0 0.0
    %929 = vmatpush1.msra.mxu0 0.0
    %930 = vmatprep.subr.mxu0 0.0
    %931 = vmatpush1.msra.mxu0 0.0
    %932 = vmatprep.mubr.f32.mxu0 0.0
    %933 = vmatmul.mubr.f32.gmra.mrb[0].mxu0 %v866
    %v934 = vpop.f32.mrb[0].mxu0
    %v935 = vadd.f32 0.0, %v934
    %v936 = vpop.f32.mrb[0].mxu0
    %v937 = vadd.f32 0.0, %v936
    %938 = vdwg.mxu0
    %v939 = vadd.f32 %v863, %v935
    %v940 = vadd.f32 %v864, %v937
    %v941 = vtanh.pop %v939
    %v942 = vtanh.pop %v940
    %v943 = vmul.f32 %v941, 0.5
    %v944 = vmul.f32 %v942, 0.5
    %v945 = vadd.f32 %v943, 0.5
    %v946 = vadd.f32 %v944, 0.5
    %v947 = vmul.f32 %v945, %v855
    %949 = vrot.lane.b32.xlu0 %v942, 64
    %v950 = vpop.permute.xlu0 %949
    %v952 = vmul.f32 %v945, %v950
    %954 = vrot.lane.b32.xlu0 %v952, 64
    %v955 = vpop.permute.xlu0 %954
    %v957 = vadd.f32 %v947, %v955
    %v958 = vtanh.pop %v957
    %960 = vrot.lane.b32.xlu0 %v958, 64
    %v961 = vpop.permute.xlu0 %960
    %v963 = vmul.f32 %v946, %v961
    %s964 = scalar_lea.vmem [#allocation2], 112
    %v965 = vld [vmem:[%s964] sm:$0xff]
    %v966 = vld [vmem:[%s964 + $0x8] sm:$0xff]
    %v968 = vsel %vm252, %v963, 0
    %970 = vmatprep.subr.mxu0 %v235
    %971 = vmatpush1.msra.mxu0 %v234
    %972 = vmatprep.subr.mxu0 %v237
    %973 = vmatpush1.msra.mxu0 %v236
    %974 = vmatprep.subr.mxu0 %v239
    %975 = vmatpush1.msra.mxu0 %v238
    %976 = vmatprep.subr.mxu0 %v241
    %977 = vmatpush1.msra.mxu0 %v240
    %978 = vmatprep.subr.mxu0 %v243
    %979 = vmatpush1.msra.mxu0 %v242
    %980 = vmatprep.subr.mxu0 %v245
    %981 = vmatpush1.msra.mxu0 %v244
    %982 = vmatprep.subr.mxu0 %v247
    %983 = vmatpush1.msra.mxu0 %v246
    %984 = vmatprep.subr.mxu0 %v249
    %985 = vmatpush1.msra.mxu0 %v248
    %986 = vmatprep.subr.mxu0 0.0
    %987 = vmatpush1.msra.mxu0 0.0
    %988 = vmatprep.subr.mxu0 0.0
    %989 = vmatpush1.msra.mxu0 0.0
    %990 = vmatprep.subr.mxu0 0.0
    %991 = vmatpush1.msra.mxu0 0.0
    %992 = vmatprep.subr.mxu0 0.0
    %993 = vmatpush1.msra.mxu0 0.0
    %994 = vmatprep.subr.mxu0 0.0
    %995 = vmatpush1.msra.mxu0 0.0
    %996 = vmatprep.subr.mxu0 0.0
    %997 = vmatpush1.msra.mxu0 0.0
    %998 = vmatprep.subr.mxu0 0.0
    %999 = vmatpush1.msra.mxu0 0.0
    %1000 = vmatprep.subr.mxu0 0.0
    %1001 = vmatpush1.msra.mxu0 0.0
    %1002 = vmatprep.subr.mxu0 0.0
    %1003 = vmatpush1.msra.mxu0 0.0
    %1004 = vmatprep.subr.mxu0 0.0
    %1005 = vmatpush1.msra.mxu0 0.0
    %1006 = vmatprep.subr.mxu0 0.0
    %1007 = vmatpush1.msra.mxu0 0.0
    %1008 = vmatprep.subr.mxu0 0.0
    %1009 = vmatpush1.msra.mxu0 0.0
    %1010 = vmatprep.subr.mxu0 0.0
    %1011 = vmatpush1.msra.mxu0 0.0
    %1012 = vmatprep.subr.mxu0 0.0
    %1013 = vmatpush1.msra.mxu0 0.0
    %1014 = vmatprep.subr.mxu0 0.0
    %1015 = vmatpush1.msra.mxu0 0.0
    %1016 = vmatprep.subr.mxu0 0.0
    %1017 = vmatpush1.msra.mxu0 0.0
    %1018 = vmatprep.subr.mxu0 0.0
    %1019 = vmatpush1.msra.mxu0 0.0
    %1020 = vmatprep.subr.mxu0 0.0
    %1021 = vmatpush1.msra.mxu0 0.0
    %1022 = vmatprep.subr.mxu0 0.0
    %1023 = vmatpush1.msra.mxu0 0.0
    %1024 = vmatprep.subr.mxu0 0.0
    %1025 = vmatpush1.msra.mxu0 0.0
    %1026 = vmatprep.subr.mxu0 0.0
    %1027 = vmatpush1.msra.mxu0 0.0
    %1028 = vmatprep.subr.mxu0 0.0
    %1029 = vmatpush1.msra.mxu0 0.0
    %1030 = vmatprep.subr.mxu0 0.0
    %1031 = vmatpush1.msra.mxu0 0.0
    %1032 = vmatprep.subr.mxu0 0.0
    %1033 = vmatpush1.msra.mxu0 0.0
    %1034 = vmatprep.mubr.f32.mxu0 0.0
    %1035 = vmatmul.mubr.f32.gmra.mrb[0].mxu0 %v968
    %v1036 = vpop.f32.mrb[0].mxu0
    %v1037 = vadd.f32 0.0, %v1036
    %v1038 = vpop.f32.mrb[0].mxu0
    %v1039 = vadd.f32 0.0, %v1038
    %1040 = vdwg.mxu0
    %v1041 = vadd.f32 %v965, %v1037
    %v1042 = vadd.f32 %v966, %v1039
    %v1043 = vtanh.pop %v1041
    %v1044 = vtanh.pop %v1042
    %v1045 = vmul.f32 %v1043, 0.5
    %v1046 = vmul.f32 %v1044, 0.5
    %v1047 = vadd.f32 %v1045, 0.5
    %v1048 = vadd.f32 %v1046, 0.5
    %v1049 = vmul.f32 %v1047, %v957
    %1051 = vrot.lane.b32.xlu0 %v1044, 64
    %v1052 = vpop.permute.xlu0 %1051
    %v1054 = vmul.f32 %v1047, %v1052
    %1056 = vrot.lane.b32.xlu0 %v1054, 64
    %v1057 = vpop.permute.xlu0 %1056
    %v1059 = vadd.f32 %v1049, %v1057
    %v1060 = vtanh.pop %v1059
    %1062 = vrot.lane.b32.xlu0 %v1060, 64
    %v1063 = vpop.permute.xlu0 %1062
    %v1065 = vmul.f32 %v1048, %v1063
    %v1066 = vld [vmem:[%s4] sm:$0xff]
    %v1067 = vld [vmem:[%s4 + $0x8] sm:$0xff]
    %v1068 = vld [vmem:[%s4 + $0x10] sm:$0xff]
    %v1069 = vld [vmem:[%s4 + $0x18] sm:$0xff]
    %v1070 = vld [vmem:[%s4 + $0x20] sm:$0xff]
    %v1071 = vld [vmem:[%s4 + $0x28] sm:$0xff]
    %v1072 = vld [vmem:[%s4 + $0x30] sm:$0xff]
    %v1073 = vld [vmem:[%s4 + $0x38] sm:$0xff]
    %v1074 = vld [vmem:[%s5] sm:$0x1]
    %v1076 = vlaneseq
    %v1077 = vshrl.u32 %v1076, 7
    %v1078 = vsub.s32 0, %v1077
    %v1079 = vrot.slane %v1074, %v1078
    %v1082 = vsel %vm252, %v1065, 0
    %1084 = vmatprep.subr.mxu0 0.0
    %1085 = vmatpush1.msra.mxu0 %v1066
    %1086 = vmatprep.subr.mxu0 0.0
    %1087 = vmatpush1.msra.mxu0 %v1067
    %1088 = vmatprep.subr.mxu0 0.0
    %1089 = vmatpush1.msra.mxu0 %v1068
    %1090 = vmatprep.subr.mxu0 0.0
    %1091 = vmatpush1.msra.mxu0 %v1069
    %1092 = vmatprep.subr.mxu0 0.0
    %1093 = vmatpush1.msra.mxu0 %v1070
    %1094 = vmatprep.subr.mxu0 0.0
    %1095 = vmatpush1.msra.mxu0 %v1071
    %1096 = vmatprep.subr.mxu0 0.0
    %1097 = vmatpush1.msra.mxu0 %v1072
    %1098 = vmatprep.subr.mxu0 0.0
    %1099 = vmatpush1.msra.mxu0 %v1073
    %1100 = vmatprep.subr.mxu0 0.0
    %1101 = vmatpush1.msra.mxu0 0.0
    %1102 = vmatprep.subr.mxu0 0.0
    %1103 = vmatpush1.msra.mxu0 0.0
    %1104 = vmatprep.subr.mxu0 0.0
    %1105 = vmatpush1.msra.mxu0 0.0
    %1106 = vmatprep.subr.mxu0 0.0
    %1107 = vmatpush1.msra.mxu0 0.0
    %1108 = vmatprep.subr.mxu0 0.0
    %1109 = vmatpush1.msra.mxu0 0.0
    %1110 = vmatprep.subr.mxu0 0.0
    %1111 = vmatpush1.msra.mxu0 0.0
    %1112 = vmatprep.subr.mxu0 0.0
    %1113 = vmatpush1.msra.mxu0 0.0
    %1114 = vmatprep.subr.mxu0 0.0
    %1115 = vmatpush1.msra.mxu0 0.0
    %1116 = vmatprep.subr.mxu0 0.0
    %1117 = vmatpush1.msra.mxu0 0.0
    %1118 = vmatprep.subr.mxu0 0.0
    %1119 = vmatpush1.msra.mxu0 0.0
    %1120 = vmatprep.subr.mxu0 0.0
    %1121 = vmatpush1.msra.mxu0 0.0
    %1122 = vmatprep.subr.mxu0 0.0
    %1123 = vmatpush1.msra.mxu0 0.0
    %1124 = vmatprep.subr.mxu0 0.0
    %1125 = vmatpush1.msra.mxu0 0.0
    %1126 = vmatprep.subr.mxu0 0.0
    %1127 = vmatpush1.msra.mxu0 0.0
    %1128 = vmatprep.subr.mxu0 0.0
    %1129 = vmatpush1.msra.mxu0 0.0
    %1130 = vmatprep.subr.mxu0 0.0
    %1131 = vmatpush1.msra.mxu0 0.0
    %1132 = vmatprep.subr.mxu0 0.0
    %1133 = vmatpush1.msra.mxu0 0.0
    %1134 = vmatprep.subr.mxu0 0.0
    %1135 = vmatpush1.msra.mxu0 0.0
    %1136 = vmatprep.subr.mxu0 0.0
    %1137 = vmatpush1.msra.mxu0 0.0
    %1138 = vmatprep.subr.mxu0 0.0
    %1139 = vmatpush1.msra.mxu0 0.0
    %1140 = vmatprep.subr.mxu0 0.0
    %1141 = vmatpush1.msra.mxu0 0.0
    %1142 = vmatprep.subr.mxu0 0.0
    %1143 = vmatpush1.msra.mxu0 0.0
    %1144 = vmatprep.subr.mxu0 0.0
    %1145 = vmatpush1.msra.mxu0 0.0
    %1146 = vmatprep.subr.mxu0 0.0
    %1147 = vmatpush1.msra.mxu0 0.0
    %1148 = vmatprep.mubr.f32.mxu0 0.0
    %1149 = vmatmul.mubr.f32.gmra.mrb[0].mxu0 %v1082
    %v1150 = vpop.f32.mrb[0].mxu0
    %v1151 = vadd.f32 %v1079, %v1150
    %v1152 = vpop.f32.mrb[0].mxu0
    %1153 = vdwg.mxu0
    %v1154 = vmax.f32 %v1151, 0.0
    %v1155 = vld [vmem:[#allocation6] sm:$0xff]
    %v1156 = vld [vmem:[#allocation6 + $0x8] sm:$0xff]
    %v1157 = vld [vmem:[#allocation6 + $0x10] sm:$0xff]
    %v1158 = vld [vmem:[#allocation6 + $0x18] sm:$0xff]
    %v1159 = vld [vmem:[#allocation6 + $0x20] sm:$0xff]
    %v1160 = vld [vmem:[#allocation6 + $0x28] sm:$0xff]
    %v1161 = vld [vmem:[#allocation6 + $0x30] sm:$0xff]
    %v1162 = vld [vmem:[#allocation6 + $0x38] sm:$0xff]
    %v1163 = vld [vmem:[%s7] sm:$0x1]
    %v1165 = vlaneseq
    %v1166 = vshrl.u32 %v1165, 7
    %v1167 = vsub.s32 0, %v1166
    %v1168 = vrot.slane %v1163, %v1167
    %v1171 = vsel %vm252, %v1154, 0
    %1173 = vmatprep.subr.mxu0 0.0
    %1174 = vmatpush1.msra.mxu0 %v1155
    %1175 = vmatprep.subr.mxu0 0.0
    %1176 = vmatpush1.msra.mxu0 %v1156
    %1177 = vmatprep.subr.mxu0 0.0
    %1178 = vmatpush1.msra.mxu0 %v1157
    %1179 = vmatprep.subr.mxu0 0.0
    %1180 = vmatpush1.msra.mxu0 %v1158
    %1181 = vmatprep.subr.mxu0 0.0
    %1182 = vmatpush1.msra.mxu0 %v1159
    %1183 = vmatprep.subr.mxu0 0.0
    %1184 = vmatpush1.msra.mxu0 %v1160
    %1185 = vmatprep.subr.mxu0 0.0
    %1186 = vmatpush1.msra.mxu0 %v1161
    %1187 = vmatprep.subr.mxu0 0.0
    %1188 = vmatpush1.msra.mxu0 %v1162
    %1189 = vmatprep.subr.mxu0 0.0
    %1190 = vmatpush1.msra.mxu0 0.0
    %1191 = vmatprep.subr.mxu0 0.0
    %1192 = vmatpush1.msra.mxu0 0.0
    %1193 = vmatprep.subr.mxu0 0.0
    %1194 = vmatpush1.msra.mxu0 0.0
    %1195 = vmatprep.subr.mxu0 0.0
    %1196 = vmatpush1.msra.mxu0 0.0
    %1197 = vmatprep.subr.mxu0 0.0
    %1198 = vmatpush1.msra.mxu0 0.0
    %1199 = vmatprep.subr.mxu0 0.0
    %1200 = vmatpush1.msra.mxu0 0.0
    %1201 = vmatprep.subr.mxu0 0.0
    %1202 = vmatpush1.msra.mxu0 0.0
    %1203 = vmatprep.subr.mxu0 0.0
    %1204 = vmatpush1.msra.mxu0 0.0
    %1205 = vmatprep.subr.mxu0 0.0
    %1206 = vmatpush1.msra.mxu0 0.0
    %1207 = vmatprep.subr.mxu0 0.0
    %1208 = vmatpush1.msra.mxu0 0.0
    %1209 = vmatprep.subr.mxu0 0.0
    %1210 = vmatpush1.msra.mxu0 0.0
    %1211 = vmatprep.subr.mxu0 0.0
    %1212 = vmatpush1.msra.mxu0 0.0
    %1213 = vmatprep.subr.mxu0 0.0
    %1214 = vmatpush1.msra.mxu0 0.0
    %1215 = vmatprep.subr.mxu0 0.0
    %1216 = vmatpush1.msra.mxu0 0.0
    %1217 = vmatprep.subr.mxu0 0.0
    %1218 = vmatpush1.msra.mxu0 0.0
    %1219 = vmatprep.subr.mxu0 0.0
    %1220 = vmatpush1.msra.mxu0 0.0
    %1221 = vmatprep.subr.mxu0 0.0
    %1222 = vmatpush1.msra.mxu0 0.0
    %1223 = vmatprep.subr.mxu0 0.0
    %1224 = vmatpush1.msra.mxu0 0.0
    %1225 = vmatprep.subr.mxu0 0.0
    %1226 = vmatpush1.msra.mxu0 0.0
    %1227 = vmatprep.subr.mxu0 0.0
    %1228 = vmatpush1.msra.mxu0 0.0
    %1229 = vmatprep.subr.mxu0 0.0
    %1230 = vmatpush1.msra.mxu0 0.0
    %1231 = vmatprep.subr.mxu0 0.0
    %1232 = vmatpush1.msra.mxu0 0.0
    %1233 = vmatprep.subr.mxu0 0.0
    %1234 = vmatpush1.msra.mxu0 0.0
    %1235 = vmatprep.subr.mxu0 0.0
    %1236 = vmatpush1.msra.mxu0 0.0
    %1237 = vmatprep.mubr.f32.mxu0 0.0
    %1238 = vmatmul.mubr.f32.gmra.mrb[0].mxu0 %v1171
    %v1239 = vpop.f32.mrb[0].mxu0
    %v1240 = vadd.f32 %v1168, %v1239
    %v1241 = vpop.f32.mrb[0].mxu0
    %1242 = vdwg.mxu0
    %1243 = vst [vmem:[#allocation8] sm:$0xff] %v1240
    // Predicated region
    $region42: #{tpu_custom_call.1} parent=1 // pred_check
      _
    $region43: #{tpu_custom_call.1} parent=1 // pred_check_branch
      %1245 = sbr.rel (0) target = $region45
    $region44: #{tpu_custom_call.1} parent=1 // pred_region
      %s1247 = ssub.s32 128, 128
      %1248 = vsyncadd [#allocation5], %s1247
      %s1250 = sshll.u32 [#allocation8], 4
      %s1251 = int_to_ptr.vmem [resolvable:$true] %s1250
      %1253 = dma.vmem_to_hbm [thread:$0]  %s1251, 128, %s8, [#allocation5]
    $region45: #{tpu_custom_call.1} parent=1 // pred_fallthru
      _
    // Predicated region
    $region46: #{tpu_custom_call.1} parent=1 // pred_check
      _
    $region47: #{tpu_custom_call.1} parent=1 // pred_check_branch
      %1255 = sbr.rel (0) target = $region49
    $region48: #{tpu_custom_call.1} parent=1 // pred_region
      %1256 = dma.done [#allocation5], 128
    $region49: #{tpu_custom_call.1} parent=1 // pred_fallthru
      _
    %1257 = vsyncpa [#allocation4], 1
    %1258 = vsyncpa [#allocation7], 1
    %1259 = vsyncpa [#allocation5], 1

</llo_original>
